<compile_context>
chip_gen: v5e
topology: v5e:2x2
jax: 0.10.0
libtpu: 0.0.40
codegen_flags: <defaults>
</compile_context>

<pallas_src>
import functools

import jax
import jax.numpy as jnp
from jax.experimental import pallas as pl
from jax.experimental.pallas import tpu as pltpu

_BN_EPS = 1e-5


def _fused_kernel(x_ref, w_ref, b_ref, gamma_ref, beta_ref,
                  o_ref, border_ref, *, m_total):
    # x_ref     : (N, Cin, HW)   one VMEM block with every un-padded input pixel
    # w_ref     : (Cout, Cin)    conv weight (1x1 kernel squeezed)
    # b_ref     : (Cout, 1)      conv bias
    # gamma_ref : (Cout, 1)      BN weight
    # beta_ref  : (Cout, 1)      BN bias
    # o_ref     : (N, Cout, HW)  interior of the padded conv output, post BN+ReLU
    # border_ref: (Cout, 1)      value of the padded ring, post BN+ReLU
    # m_total   : static python float = N * (H+2) * (W+2)  (BN population incl. ring)
    n_img, cin, hw = x_ref.shape
    f32 = jnp.float32
    highest = jax.lax.Precision.HIGHEST

    w = w_ref[...]                                       # (Cout, Cin)
    b = b_ref[...]                                       # (Cout, 1)
    gamma = gamma_ref[...]
    beta = beta_ref[...]
    w_aug = jnp.concatenate([w, b], axis=1)              # (Cout, Cin+1): y = w_aug @ [x;1]

    # Augmented pixel blocks [x ; 1]  -> (Cin+1 = 8, HW = 256), lane-dense, loaded once.
    ones_row = jnp.ones((1, hw), f32)
    xs = [jnp.concatenate([x_ref[n], ones_row], axis=0) for n in range(n_img)]

    # ---------- phase 1: augmented Gram matrix over all interior pixels ----------
    #   G = sum_p [x_p;1][x_p;1]^T   holds S2 (Cin x Cin), S1 (last column) and N*HW.
    g = jnp.zeros((cin + 1, cin + 1), f32)
    for xa in xs:
        g = g + jax.lax.dot_general(
            xa, xa, dimension_numbers=(((1,), (1,)), ((), ())),
            preferred_element_type=f32, precision=highest)

    # ---------- phase 2: closed-form BatchNorm fold (tiny (Cout, Cin+1) math) ----------
    # Padded-ring conv output equals the bias; add its contribution analytically.
    ring = m_total - float(n_img * hw)                   # number of ring pixels (static)
    inv_m = 1.0 / m_total
    wg = jnp.dot(w_aug, g, preferred_element_type=f32, precision=highest)  # (Cout, Cin+1)
    sum_y = wg[:, cin:cin + 1] + b * ring                                  # (Cout, 1)
    sum_y2 = jnp.sum(wg * w_aug, axis=1, keepdims=True) + (b * b) * ring   # (Cout, 1)
    mean = sum_y * inv_m
    var = jnp.maximum(sum_y2 * inv_m - mean * mean, 0.0)                   # biased variance
    a = gamma * jax.lax.rsqrt(var + _BN_EPS)
    w_aug_eff = w_aug * a                                # (Cout, Cin+1): BN folded into conv
    shift = beta - a * mean                              # (Cout, 1)

    # ---------- phase 3: folded conv + BN + ReLU, one MXU dot + one dense store / image ----------
    for n in range(n_img):
        y = jnp.dot(w_aug_eff, xs[n],
                    preferred_element_type=f32, precision=highest) + shift
        o_ref[n] = jnp.maximum(y, 0.0)                   # (Cout, 256) unmasked lane-dense store

    border_ref[...] = jnp.maximum(a * b + shift, 0.0)    # ring value = relu(b_eff)


@jax.jit
def model_forward(x, conv_w, conv_b, bn_gamma, bn_beta):
    """x: (N, Cin, H, W) float32 NCHW. Returns (N, Cout, H+2, W+2) float32 NCHW."""
    N, Cin, H, W = x.shape
    Cout = conv_w.shape[0]
    Hp, Wp = H + 2, W + 2
    HW = H * W

    x_flat = x.reshape(N, Cin, HW)                               # free view, no HBM copy
    w2 = conv_w.reshape(Cout, Cin).astype(jnp.float32)
    b2 = conv_b.reshape(Cout, 1).astype(jnp.float32)
    g2 = bn_gamma.reshape(Cout, 1).astype(jnp.float32)
    bb2 = bn_beta.reshape(Cout, 1).astype(jnp.float32)

    kernel = functools.partial(_fused_kernel, m_total=float(N * Hp * Wp))
    vmem = pl.BlockSpec(memory_space=pltpu.MemorySpace.VMEM)     # whole array in VMEM, no grid
    interior, border = pl.pallas_call(
        kernel,
        out_shape=(jax.ShapeDtypeStruct((N, Cout, HW), jnp.float32),
                   jax.ShapeDtypeStruct((Cout, 1), jnp.float32)),
        in_specs=[vmem, vmem, vmem, vmem, vmem],
        out_specs=(vmem, vmem),
    )(x_flat, w2, b2, g2, bb2)

    # Trivial fused XLA epilogue: paste the constant per-channel border ring.
    interior = interior.reshape(N, Cout, H, W)
    border = border.reshape(1, Cout, 1, 1)
    return jnp.pad(interior - border, ((0, 0), (0, 0), (1, 1), (1, 1))) + border


if __name__ == "__main__":
    # Exact f32 matmuls for the plain-JAX reference (kernel dots are HIGHEST explicitly).
    jax.config.update("jax_default_matmul_precision", "highest")

    key = jax.random.PRNGKey(0)
    k_x, k_w, k_b = jax.random.split(key, 3)

    N, C, H, W = 2, 7, 16, 16          # module fixes channels = 7

    bound = 1.0 / (C ** 0.5)           # torch-like uniform init scale for a 1x1 conv
    conv_w = jax.random.uniform(k_w, (C, C, 1, 1), jnp.float32, -bound, bound)
    conv_b = jax.random.uniform(k_b, (C,), jnp.float32, -bound, bound)
    bn_gamma = jnp.ones((C,), jnp.float32)    # BatchNorm2d default affine init
    bn_beta = jnp.zeros((C,), jnp.float32)

    x = jax.random.normal(k_x, (N, C, H, W), jnp.float32)

    out = model_forward(x, conv_w, conv_b, bn_gamma, bn_beta)
    jax.block_until_ready(out)

    assert out.shape == (N, C, H + 2, W + 2), out.shape
    assert out.dtype == jnp.float32

    # Plain-JAX reference (conv w/ padding -> training-mode BN -> ReLU; final where is a no-op).
    xp = jnp.pad(x, ((0, 0), (0, 0), (1, 1), (1, 1)))
    y = jnp.einsum("oc,nchw->nohw", conv_w.reshape(C, C), xp) + conv_b[None, :, None, None]
    mu = y.mean(axis=(0, 2, 3), keepdims=True)
    var = y.var(axis=(0, 2, 3), keepdims=True)
    ref = jnp.maximum((y - mu) * jax.lax.rsqrt(var + _BN_EPS)
                      * bn_gamma[None, :, None, None] + bn_beta[None, :, None, None], 0.0)
    max_err = float(jnp.max(jnp.abs(out - ref)))
    assert jnp.allclose(out, ref, atol=2e-3, rtol=2e-3), max_err

    print("KERNEL_OK")
</pallas_src>

<mosaic_0001>
module attributes {stable_mosaic.version = 11 : i64} {
  func.func @_fused_kernel(%arg0: memref<2x7x256xf32, #tpu.memory_space<vmem>>, %arg1: memref<7x7xf32, #tpu.memory_space<vmem>>, %arg2: memref<7x1xf32, #tpu.memory_space<vmem>>, %arg3: memref<7x1xf32, #tpu.memory_space<vmem>>, %arg4: memref<7x1xf32, #tpu.memory_space<vmem>>, %arg5: memref<2x7x256xf32, #tpu.memory_space<vmem>>, %arg6: memref<7x1xf32, #tpu.memory_space<vmem>>) attributes {dimension_semantics = [], scalar_prefetch = 0 : i64, scratch_operands = 0 : i64, tpu.core_type = #tpu.core_type<tc>} {
    %c0 = arith.constant 0 : index
    %c0_0 = arith.constant 0 : index
    %0 = vector.load %arg1[%c0, %c0_0] : memref<7x7xf32, #tpu.memory_space<vmem>>, vector<7x7xf32>
    %c0_1 = arith.constant 0 : index
    %c0_2 = arith.constant 0 : index
    %1 = vector.load %arg2[%c0_1, %c0_2] : memref<7x1xf32, #tpu.memory_space<vmem>>, vector<7x1xf32>
    %c0_3 = arith.constant 0 : index
    %c0_4 = arith.constant 0 : index
    %2 = vector.load %arg3[%c0_3, %c0_4] : memref<7x1xf32, #tpu.memory_space<vmem>>, vector<7x1xf32>
    %c0_5 = arith.constant 0 : index
    %c0_6 = arith.constant 0 : index
    %3 = vector.load %arg4[%c0_5, %c0_6] : memref<7x1xf32, #tpu.memory_space<vmem>>, vector<7x1xf32>
    %4 = tpu.concatenate %0, %1 in 1 : vector<7x7xf32>, vector<7x1xf32> -> vector<7x8xf32>
    %cst = arith.constant 1.000000e+00 : f32
    %5 = vector.broadcast %cst : f32 to vector<1x256xf32>
    %c0_7 = arith.constant 0 : index
    %c0_8 = arith.constant 0 : index
    %c0_9 = arith.constant 0 : index
    %6 = vector.load %arg0[%c0_7, %c0_8, %c0_9] : memref<2x7x256xf32, #tpu.memory_space<vmem>>, vector<1x7x256xf32>
    %7 = vector.shape_cast %6 : vector<1x7x256xf32> to vector<7x256xf32>
    %8 = tpu.concatenate %7, %5 in 0 : vector<7x256xf32>, vector<1x256xf32> -> vector<8x256xf32>
    %c1 = arith.constant 1 : index
    %c0_10 = arith.constant 0 : index
    %c0_11 = arith.constant 0 : index
    %9 = vector.load %arg0[%c1, %c0_10, %c0_11] : memref<2x7x256xf32, #tpu.memory_space<vmem>>, vector<1x7x256xf32>
    %10 = vector.shape_cast %9 : vector<1x7x256xf32> to vector<7x256xf32>
    %11 = tpu.concatenate %10, %5 in 0 : vector<7x256xf32>, vector<1x256xf32> -> vector<8x256xf32>
    %cst_12 = arith.constant 0.000000e+00 : f32
    %12 = vector.broadcast %cst_12 : f32 to vector<8x8xf32>
    %cst_13 = arith.constant dense<0.000000e+00> : vector<8x8xf32>
    %13 = tpu.matmul %8, %8, %cst_13 {dimension_numbers = #tpu.dot_dimension_numbers<[1], [1], [0], [0], [0, 0, 1, 0], [], []>, precision = #tpu.contract_precision<fp32>} : vector<8x256xf32>, vector<8x256xf32>, vector<8x8xf32> -> vector<8x8xf32>
    %14 = arith.addf %12, %13 : vector<8x8xf32>
    %cst_14 = arith.constant dense<0.000000e+00> : vector<8x8xf32>
    %15 = tpu.matmul %11, %11, %cst_14 {dimension_numbers = #tpu.dot_dimension_numbers<[1], [1], [0], [0], [0, 0, 1, 0], [], []>, precision = #tpu.contract_precision<fp32>} : vector<8x256xf32>, vector<8x256xf32>, vector<8x8xf32> -> vector<8x8xf32>
    %16 = arith.addf %14, %15 : vector<8x8xf32>
    %cst_15 = arith.constant dense<0.000000e+00> : vector<7x8xf32>
    %17 = tpu.matmul %4, %16, %cst_15 {dimension_numbers = #tpu.dot_dimension_numbers<[1], [0], [0], [1], [0, 0, 1, 1], [], []>, precision = #tpu.contract_precision<fp32>} : vector<7x8xf32>, vector<8x8xf32>, vector<7x8xf32> -> vector<7x8xf32>
    %18 = vector.extract_strided_slice %17 {offsets = [0, 7], sizes = [7, 1], strides = [1, 1]} : vector<7x8xf32> to vector<7x1xf32>
    %cst_16 = arith.constant 1.360000e+02 : f32
    %19 = vector.broadcast %cst_16 : f32 to vector<7x1xf32>
    %20 = arith.mulf %1, %19 : vector<7x1xf32>
    %21 = arith.addf %18, %20 : vector<7x1xf32>
    %22 = arith.mulf %17, %4 : vector<7x8xf32>
    %cst_17 = arith.constant dense<0.000000e+00> : vector<7xf32>
    %23 = vector.multi_reduction <add>, %22, %cst_17 [1] : vector<7x8xf32> to vector<7xf32>
    %24 = vector.shape_cast %23 : vector<7xf32> to vector<7x1xf32>
    %25 = arith.mulf %1, %1 : vector<7x1xf32>
    %cst_18 = arith.constant 1.360000e+02 : f32
    %26 = vector.broadcast %cst_18 : f32 to vector<7x1xf32>
    %27 = arith.mulf %25, %26 : vector<7x1xf32>
    %28 = arith.addf %24, %27 : vector<7x1xf32>
    %cst_19 = arith.constant 0.00154320989 : f32
    %29 = vector.broadcast %cst_19 : f32 to vector<7x1xf32>
    %30 = arith.mulf %21, %29 : vector<7x1xf32>
    %cst_20 = arith.constant 0.00154320989 : f32
    %31 = vector.broadcast %cst_20 : f32 to vector<7x1xf32>
    %32 = arith.mulf %28, %31 : vector<7x1xf32>
    %33 = arith.mulf %30, %30 : vector<7x1xf32>
    %34 = arith.subf %32, %33 : vector<7x1xf32>
    %cst_21 = arith.constant 0.000000e+00 : f32
    %35 = vector.broadcast %cst_21 : f32 to vector<7x1xf32>
    %36 = arith.maximumf %34, %35 : vector<7x1xf32>
    %cst_22 = arith.constant 9.99999974E-6 : f32
    %37 = vector.broadcast %cst_22 : f32 to vector<7x1xf32>
    %38 = arith.addf %36, %37 : vector<7x1xf32>
    %39 = math.rsqrt %38 : vector<7x1xf32>
    %40 = arith.mulf %2, %39 : vector<7x1xf32>
    %41 = vector.broadcast %40 : vector<7x1xf32> to vector<7x8xf32>
    %42 = arith.mulf %4, %41 : vector<7x8xf32>
    %43 = arith.mulf %40, %30 : vector<7x1xf32>
    %44 = arith.subf %3, %43 : vector<7x1xf32>
    %cst_23 = arith.constant dense<0.000000e+00> : vector<7x256xf32>
    %45 = tpu.matmul %42, %8, %cst_23 {dimension_numbers = #tpu.dot_dimension_numbers<[1], [0], [0], [1], [0, 0, 1, 1], [], []>, precision = #tpu.contract_precision<fp32>} : vector<7x8xf32>, vector<8x256xf32>, vector<7x256xf32> -> vector<7x256xf32>
    %46 = vector.broadcast %44 : vector<7x1xf32> to vector<7x256xf32>
    %47 = arith.addf %45, %46 : vector<7x256xf32>
    %cst_24 = arith.constant 0.000000e+00 : f32
    %48 = vector.broadcast %cst_24 : f32 to vector<7x256xf32>
    %49 = arith.maximumf %47, %48 : vector<7x256xf32>
    %c0_25 = arith.constant 0 : index
    %c0_26 = arith.constant 0 : index
    %c0_27 = arith.constant 0 : index
    %50 = vector.load %arg5[%c0_25, %c0_26, %c0_27] : memref<2x7x256xf32, #tpu.memory_space<vmem>>, vector<1x7x256xf32>
    %51 = vector.shape_cast %50 : vector<1x7x256xf32> to vector<7x256xf32>
    %52 = vector.shape_cast %49 : vector<7x256xf32> to vector<1x7x256xf32>
    tpu.vector_store %arg5[%c0_25, %c0_26, %c0_27], %52 {strides = array<i32>} : memref<2x7x256xf32, #tpu.memory_space<vmem>>, vector<1x7x256xf32>,
    %cst_28 = arith.constant dense<0.000000e+00> : vector<7x256xf32>
    %53 = tpu.matmul %42, %11, %cst_28 {dimension_numbers = #tpu.dot_dimension_numbers<[1], [0], [0], [1], [0, 0, 1, 1], [], []>, precision = #tpu.contract_precision<fp32>} : vector<7x8xf32>, vector<8x256xf32>, vector<7x256xf32> -> vector<7x256xf32>
    %54 = vector.broadcast %44 : vector<7x1xf32> to vector<7x256xf32>
    %55 = arith.addf %53, %54 : vector<7x256xf32>
    %cst_29 = arith.constant 0.000000e+00 : f32
    %56 = vector.broadcast %cst_29 : f32 to vector<7x256xf32>
    %57 = arith.maximumf %55, %56 : vector<7x256xf32>
    %c1_30 = arith.constant 1 : index
    %c0_31 = arith.constant 0 : index
    %c0_32 = arith.constant 0 : index
    %58 = vector.load %arg5[%c1_30, %c0_31, %c0_32] : memref<2x7x256xf32, #tpu.memory_space<vmem>>, vector<1x7x256xf32>
    %59 = vector.shape_cast %58 : vector<1x7x256xf32> to vector<7x256xf32>
    %60 = vector.shape_cast %57 : vector<7x256xf32> to vector<1x7x256xf32>
    tpu.vector_store %arg5[%c1_30, %c0_31, %c0_32], %60 {strides = array<i32>} : memref<2x7x256xf32, #tpu.memory_space<vmem>>, vector<1x7x256xf32>,
    %61 = arith.mulf %40, %1 : vector<7x1xf32>
    %62 = arith.addf %61, %44 : vector<7x1xf32>
    %cst_33 = arith.constant 0.000000e+00 : f32
    %63 = vector.broadcast %cst_33 : f32 to vector<7x1xf32>
    %64 = arith.maximumf %62, %63 : vector<7x1xf32>
    %c0_34 = arith.constant 0 : index
    %c0_35 = arith.constant 0 : index
    %65 = vector.load %arg6[%c0_34, %c0_35] : memref<7x1xf32, #tpu.memory_space<vmem>>, vector<7x1xf32>
    tpu.vector_store %arg6[%c0_34, %c0_35], %64 {strides = array<i32>} : memref<7x1xf32, #tpu.memory_space<vmem>>, vector<7x1xf32>,
    return
  }
}

</mosaic_0001>

<llo_original>
// kernel: model_forward.1
$region0: #{model_forward.1}
  #allocation0 [shape = 'u32[]', space=smem, size = 0x4, offset = 0x4, fixed_abs, tag = 'smem constant byte address 0x4 - core index']
  #allocation1 [shape = 'u32[72,128]{1,0:T(1,128)}', space=vmem, size = 0x9000, scoped, tag = 'internal scratch']
  %s0 = inlined_call_operand.vmem [shape: f32[2,7,256], index: 0, kind: input, shape index: {}]
  %s1 = inlined_call_operand.vmem [shape: f32[7,7], index: 1, kind: input, shape index: {}]
  %s2 = inlined_call_operand.vmem [shape: f32[7,1], index: 2, kind: input, shape index: {}]
  %s3 = inlined_call_operand.vmem [shape: f32[7,1], index: 3, kind: input, shape index: {}]
  %s4 = inlined_call_operand.vmem [shape: f32[7,1], index: 4, kind: input, shape index: {}]
  %s5 = inlined_call_operand.vmem [shape: f32[2,7,256], index: 5, kind: output, shape index: {0}]
  %s6 = inlined_call_operand.vmem [shape: f32[7,1], index: 6, kind: output, shape index: {1}]
  %7 = xla_tuple %s5, %s6
  %s8 = sld [smem:[#allocation0]]
  $region38: #{model_forward.1} parent=0
    _
  %s10 = ssub.s32 1, %s8
  %s11 = scalar_select 0, %s10, %s8
  // Predicated region
  $region2: #{model_forward.1} parent=0 // pred_check
    _
  $region3: #{model_forward.1} parent=0 // pred_check_branch
    %13 = sbr.rel (0) target = $region5
  $region4: #{model_forward.1} parent=0 // pred_region
    _
  $region5: #{model_forward.1} parent=0 // pred_fallthru
    _
  // Predicated region
  $region6: #{model_forward.1} parent=0 // pred_check
    _
  $region7: #{model_forward.1} parent=0 // pred_check_branch
    %15 = sbr.rel (0) target = $region9
  $region8: #{model_forward.1} parent=0 // pred_region
    _
  $region9: #{model_forward.1} parent=0 // pred_fallthru
    _
  // Predicated region
  $region10: #{model_forward.1} parent=0 // pred_check
    _
  $region11: #{model_forward.1} parent=0 // pred_check_branch
    %17 = sbr.rel (0) target = $region13
  $region12: #{model_forward.1} parent=0 // pred_region
    _
  $region13: #{model_forward.1} parent=0 // pred_fallthru
    _
  // Predicated region
  $region14: #{model_forward.1} parent=0 // pred_check
    _
  $region15: #{model_forward.1} parent=0 // pred_check_branch
    %19 = sbr.rel (0) target = $region17
  $region16: #{model_forward.1} parent=0 // pred_region
    _
  $region17: #{model_forward.1} parent=0 // pred_fallthru
    _
  // Predicated region
  $region18: #{model_forward.1} parent=0 // pred_check
    _
  $region19: #{model_forward.1} parent=0 // pred_check_branch
    %21 = sbr.rel (0) target = $region21
  $region20: #{model_forward.1} parent=0 // pred_region
    _
  $region21: #{model_forward.1} parent=0 // pred_fallthru
    _
  %v22 = vld [vmem:[%s1] sm:$0x7f]
  %v23 = vld [vmem:[%s2] sm:$0x7f]
  %v24 = vld [vmem:[%s3] sm:$0x7f]
  %v25 = vld [vmem:[%s4] sm:$0x7f]
  %27 = vrot.lane.b32.xlu0 %v23, 7
  %v28 = vpop.permute.xlu0 %27
  %vm30 = vcmask 56320
  %v31 = vsel %vm30, %v22, %v28
  %v32 = vld [vmem:[%s0] sm:$0x7f]
  %v33 = vld [vmem:[%s0 + $0x8] sm:$0x7f]
  %vm34 = vcmask 1046528
  %v35 = vsel %vm34, %v32, 1.0
  %v36 = vsel %vm34, %v33, 1.0
  %s37 = scalar_lea.vmem %s0, 16
  %v38 = vld [vmem:[%s37] sm:$0x7f]
  %v39 = vld [vmem:[%s37 + $0x8] sm:$0x7f]
  %v40 = vsel %vm34, %v38, 1.0
  %v41 = vsel %vm34, %v39, 1.0
  %42 = vmatpush.xpose.msra.mxu0 0.0
  %43 = vmatpush.xpose.msra.mxu0 0.0
  %44 = vmatpush.xpose.msra.mxu0 0.0
  %45 = vmatpush.xpose.msra.mxu0 0.0
  %46 = vmatpush.xpose.msra.mxu0 0.0
  %47 = vmatpush.xpose.msra.mxu0 0.0
  %48 = vmatpush.xpose.msra.mxu0 0.0
  %49 = vmatpush.xpose.msra.mxu0 0.0
  %50 = vmatpush.xpose.msra.mxu0 0.0
  %51 = vmatpush.xpose.msra.mxu0 0.0
  %52 = vmatpush.xpose.msra.mxu0 0.0
  %53 = vmatpush.xpose.msra.mxu0 0.0
  %54 = vmatpush.xpose.msra.mxu0 0.0
  %55 = vmatpush.xpose.msra.mxu0 0.0
  %56 = vmatpush.xpose.msra.mxu0 0.0
  %v57 = vand.u32 %v40, 4294901760
  %58 = vmatpush.xpose.msra.mxu0 %v57
  %v59 = vand.u32 %v40, 4294901760
  %v60 = vsub.f32 %v40, %v59
  %v61 = vand.u32 %v60, 4294901760
  %v62 = vsub.f32 %v60, %v61
  %v63 = vand.u32 %v62, 4294901760
  %64 = vmatmul.f32.gmra.mxu0 %v63
  %v65 = vpop.f32.mrf.mxu0
  %v66 = vadd.f32 0.0, %v65
  %67 = vdwg.mxu0
  %68 = vmatpush.xpose.msra.mxu0 0.0
  %69 = vmatpush.xpose.msra.mxu0 0.0
  %70 = vmatpush.xpose.msra.mxu0 0.0
  %71 = vmatpush.xpose.msra.mxu0 0.0
  %72 = vmatpush.xpose.msra.mxu0 0.0
  %73 = vmatpush.xpose.msra.mxu0 0.0
  %74 = vmatpush.xpose.msra.mxu0 0.0
  %75 = vmatpush.xpose.msra.mxu0 0.0
  %76 = vmatpush.xpose.msra.mxu0 0.0
  %77 = vmatpush.xpose.msra.mxu0 0.0
  %78 = vmatpush.xpose.msra.mxu0 0.0
  %79 = vmatpush.xpose.msra.mxu0 0.0
  %80 = vmatpush.xpose.msra.mxu0 0.0
  %81 = vmatpush.xpose.msra.mxu0 0.0
  %82 = vmatpush.xpose.msra.mxu0 0.0
  %v83 = vand.u32 %v40, 4294901760
  %v84 = vsub.f32 %v40, %v83
  %v85 = vand.u32 %v84, 4294901760
  %v86 = vsub.f32 %v84, %v85
  %v87 = vand.u32 %v86, 4294901760
  %88 = vmatpush.xpose.msra.mxu0 %v87
  %v89 = vand.u32 %v40, 4294901760
  %90 = vmatmul.f32.gmra.mxu0 %v89
  %v91 = vpop.f32.mrf.mxu0
  %v92 = vadd.f32 %v66, %v91
  %93 = vdwg.mxu0
  %94 = vmatpush.xpose.msra.mxu0 0.0
  %95 = vmatpush.xpose.msra.mxu0 0.0
  %96 = vmatpush.xpose.msra.mxu0 0.0
  %97 = vmatpush.xpose.msra.mxu0 0.0
  %98 = vmatpush.xpose.msra.mxu0 0.0
  %99 = vmatpush.xpose.msra.mxu0 0.0
  %100 = vmatpush.xpose.msra.mxu0 0.0
  %101 = vmatpush.xpose.msra.mxu0 0.0
  %102 = vmatpush.xpose.msra.mxu0 0.0
  %103 = vmatpush.xpose.msra.mxu0 0.0
  %104 = vmatpush.xpose.msra.mxu0 0.0
  %105 = vmatpush.xpose.msra.mxu0 0.0
  %106 = vmatpush.xpose.msra.mxu0 0.0
  %107 = vmatpush.xpose.msra.mxu0 0.0
  %108 = vmatpush.xpose.msra.mxu0 0.0
  %v109 = vand.u32 %v40, 4294901760
  %v110 = vsub.f32 %v40, %v109
  %111 = vmatpush.xpose.msra.mxu0 %v110
  %v112 = vand.u32 %v40, 4294901760
  %v113 = vsub.f32 %v40, %v112
  %114 = vmatmul.f32.gmra.mxu0 %v113
  %v115 = vpop.f32.mrf.mxu0
  %v116 = vadd.f32 %v92, %v115
  %117 = vdwg.mxu0
  %118 = vmatpush.xpose.msra.mxu0 0.0
  %119 = vmatpush.xpose.msra.mxu0 0.0
  %120 = vmatpush.xpose.msra.mxu0 0.0
  %121 = vmatpush.xpose.msra.mxu0 0.0
  %122 = vmatpush.xpose.msra.mxu0 0.0
  %123 = vmatpush.xpose.msra.mxu0 0.0
  %124 = vmatpush.xpose.msra.mxu0 0.0
  %125 = vmatpush.xpose.msra.mxu0 0.0
  %126 = vmatpush.xpose.msra.mxu0 0.0
  %127 = vmatpush.xpose.msra.mxu0 0.0
  %128 = vmatpush.xpose.msra.mxu0 0.0
  %129 = vmatpush.xpose.msra.mxu0 0.0
  %130 = vmatpush.xpose.msra.mxu0 0.0
  %131 = vmatpush.xpose.msra.mxu0 0.0
  %132 = vmatpush.xpose.msra.mxu0 0.0
  %v133 = vand.u32 %v40, 4294901760
  %134 = vmatpush.xpose.msra.mxu0 %v133
  %v135 = vand.u32 %v40, 4294901760
  %v136 = vsub.f32 %v40, %v135
  %v137 = vand.u32 %v136, 4294901760
  %138 = vmatmul.f32.gmra.mxu0 %v137
  %v139 = vpop.f32.mrf.mxu0
  %v140 = vadd.f32 %v116, %v139
  %141 = vdwg.mxu0
  %142 = vmatpush.xpose.msra.mxu0 0.0
  %143 = vmatpush.xpose.msra.mxu0 0.0
  %144 = vmatpush.xpose.msra.mxu0 0.0
  %145 = vmatpush.xpose.msra.mxu0 0.0
  %146 = vmatpush.xpose.msra.mxu0 0.0
  %147 = vmatpush.xpose.msra.mxu0 0.0
  %148 = vmatpush.xpose.msra.mxu0 0.0
  %149 = vmatpush.xpose.msra.mxu0 0.0
  %150 = vmatpush.xpose.msra.mxu0 0.0
  %151 = vmatpush.xpose.msra.mxu0 0.0
  %152 = vmatpush.xpose.msra.mxu0 0.0
  %153 = vmatpush.xpose.msra.mxu0 0.0
  %154 = vmatpush.xpose.msra.mxu0 0.0
  %155 = vmatpush.xpose.msra.mxu0 0.0
  %156 = vmatpush.xpose.msra.mxu0 0.0
  %v157 = vand.u32 %v40, 4294901760
  %v158 = vsub.f32 %v40, %v157
  %v159 = vand.u32 %v158, 4294901760
  %160 = vmatpush.xpose.msra.mxu0 %v159
  %v161 = vand.u32 %v40, 4294901760
  %162 = vmatmul.f32.gmra.mxu0 %v161
  %v163 = vpop.f32.mrf.mxu0
  %v164 = vadd.f32 %v140, %v163
  %165 = vdwg.mxu0
  %166 = vmatpush.xpose.msra.mxu0 0.0
  %167 = vmatpush.xpose.msra.mxu0 0.0
  %168 = vmatpush.xpose.msra.mxu0 0.0
  %169 = vmatpush.xpose.msra.mxu0 0.0
  %170 = vmatpush.xpose.msra.mxu0 0.0
  %171 = vmatpush.xpose.msra.mxu0 0.0
  %172 = vmatpush.xpose.msra.mxu0 0.0
  %173 = vmatpush.xpose.msra.mxu0 0.0
  %174 = vmatpush.xpose.msra.mxu0 0.0
  %175 = vmatpush.xpose.msra.mxu0 0.0
  %176 = vmatpush.xpose.msra.mxu0 0.0
  %177 = vmatpush.xpose.msra.mxu0 0.0
  %178 = vmatpush.xpose.msra.mxu0 0.0
  %179 = vmatpush.xpose.msra.mxu0 0.0
  %180 = vmatpush.xpose.msra.mxu0 0.0
  %v181 = vand.u32 %v40, 4294901760
  %182 = vmatpush.xpose.msra.mxu0 %v181
  %v183 = vand.u32 %v40, 4294901760
  %184 = vmatmul.f32.gmra.mxu0 %v183
  %v185 = vpop.f32.mrf.mxu0
  %v186 = vadd.f32 %v164, %v185
  %187 = vdwg.mxu0
  %188 = vmatpush.xpose.msra.mxu0 0.0
  %189 = vmatpush.xpose.msra.mxu0 0.0
  %190 = vmatpush.xpose.msra.mxu0 0.0
  %191 = vmatpush.xpose.msra.mxu0 0.0
  %192 = vmatpush.xpose.msra.mxu0 0.0
  %193 = vmatpush.xpose.msra.mxu0 0.0
  %194 = vmatpush.xpose.msra.mxu0 0.0
  %195 = vmatpush.xpose.msra.mxu0 0.0
  %196 = vmatpush.xpose.msra.mxu0 0.0
  %197 = vmatpush.xpose.msra.mxu0 0.0
  %198 = vmatpush.xpose.msra.mxu0 0.0
  %199 = vmatpush.xpose.msra.mxu0 0.0
  %200 = vmatpush.xpose.msra.mxu0 0.0
  %201 = vmatpush.xpose.msra.mxu0 0.0
  %202 = vmatpush.xpose.msra.mxu0 0.0
  %v203 = vand.u32 %v41, 4294901760
  %204 = vmatpush.xpose.msra.mxu0 %v203
  %v205 = vand.u32 %v41, 4294901760
  %v206 = vsub.f32 %v41, %v205
  %v207 = vand.u32 %v206, 4294901760
  %v208 = vsub.f32 %v206, %v207
  %v209 = vand.u32 %v208, 4294901760
  %210 = vmatmul.f32.gmra.mxu0 %v209
  %v211 = vpop.f32.mrf.mxu0
  %v212 = vadd.f32 %v186, %v211
  %213 = vdwg.mxu0
  %214 = vmatpush.xpose.msra.mxu0 0.0
  %215 = vmatpush.xpose.msra.mxu0 0.0
  %216 = vmatpush.xpose.msra.mxu0 0.0
  %217 = vmatpush.xpose.msra.mxu0 0.0
  %218 = vmatpush.xpose.msra.mxu0 0.0
  %219 = vmatpush.xpose.msra.mxu0 0.0
  %220 = vmatpush.xpose.msra.mxu0 0.0
  %221 = vmatpush.xpose.msra.mxu0 0.0
  %222 = vmatpush.xpose.msra.mxu0 0.0
  %223 = vmatpush.xpose.msra.mxu0 0.0
  %224 = vmatpush.xpose.msra.mxu0 0.0
  %225 = vmatpush.xpose.msra.mxu0 0.0
  %226 = vmatpush.xpose.msra.mxu0 0.0
  %227 = vmatpush.xpose.msra.mxu0 0.0
  %228 = vmatpush.xpose.msra.mxu0 0.0
  %v229 = vand.u32 %v41, 4294901760
  %v230 = vsub.f32 %v41, %v229
  %v231 = vand.u32 %v230, 4294901760
  %v232 = vsub.f32 %v230, %v231
  %v233 = vand.u32 %v232, 4294901760
  %234 = vmatpush.xpose.msra.mxu0 %v233
  %v235 = vand.u32 %v41, 4294901760
  %236 = vmatmul.f32.gmra.mxu0 %v235
  %v237 = vpop.f32.mrf.mxu0
  %v238 = vadd.f32 %v212, %v237
  %239 = vdwg.mxu0
  %240 = vmatpush.xpose.msra.mxu0 0.0
  %241 = vmatpush.xpose.msra.mxu0 0.0
  %242 = vmatpush.xpose.msra.mxu0 0.0
  %243 = vmatpush.xpose.msra.mxu0 0.0
  %244 = vmatpush.xpose.msra.mxu0 0.0
  %245 = vmatpush.xpose.msra.mxu0 0.0
  %246 = vmatpush.xpose.msra.mxu0 0.0
  %247 = vmatpush.xpose.msra.mxu0 0.0
  %248 = vmatpush.xpose.msra.mxu0 0.0
  %249 = vmatpush.xpose.msra.mxu0 0.0
  %250 = vmatpush.xpose.msra.mxu0 0.0
  %251 = vmatpush.xpose.msra.mxu0 0.0
  %252 = vmatpush.xpose.msra.mxu0 0.0
  %253 = vmatpush.xpose.msra.mxu0 0.0
  %254 = vmatpush.xpose.msra.mxu0 0.0
  %v255 = vand.u32 %v41, 4294901760
  %v256 = vsub.f32 %v41, %v255
  %257 = vmatpush.xpose.msra.mxu0 %v256
  %v258 = vand.u32 %v41, 4294901760
  %v259 = vsub.f32 %v41, %v258
  %260 = vmatmul.f32.gmra.mxu0 %v259
  %v261 = vpop.f32.mrf.mxu0
  %v262 = vadd.f32 %v238, %v261
  %263 = vdwg.mxu0
  %264 = vmatpush.xpose.msra.mxu0 0.0
  %265 = vmatpush.xpose.msra.mxu0 0.0
  %266 = vmatpush.xpose.msra.mxu0 0.0
  %267 = vmatpush.xpose.msra.mxu0 0.0
  %268 = vmatpush.xpose.msra.mxu0 0.0
  %269 = vmatpush.xpose.msra.mxu0 0.0
  %270 = vmatpush.xpose.msra.mxu0 0.0
  %271 = vmatpush.xpose.msra.mxu0 0.0
  %272 = vmatpush.xpose.msra.mxu0 0.0
  %273 = vmatpush.xpose.msra.mxu0 0.0
  %274 = vmatpush.xpose.msra.mxu0 0.0
  %275 = vmatpush.xpose.msra.mxu0 0.0
  %276 = vmatpush.xpose.msra.mxu0 0.0
  %277 = vmatpush.xpose.msra.mxu0 0.0
  %278 = vmatpush.xpose.msra.mxu0 0.0
  %v279 = vand.u32 %v41, 4294901760
  %280 = vmatpush.xpose.msra.mxu0 %v279
  %v281 = vand.u32 %v41, 4294901760
  %v282 = vsub.f32 %v41, %v281
  %v283 = vand.u32 %v282, 4294901760
  %284 = vmatmul.f32.gmra.mxu0 %v283
  %v285 = vpop.f32.mrf.mxu0
  %v286 = vadd.f32 %v262, %v285
  %287 = vdwg.mxu0
  %288 = vmatpush.xpose.msra.mxu0 0.0
  %289 = vmatpush.xpose.msra.mxu0 0.0
  %290 = vmatpush.xpose.msra.mxu0 0.0
  %291 = vmatpush.xpose.msra.mxu0 0.0
  %292 = vmatpush.xpose.msra.mxu0 0.0
  %293 = vmatpush.xpose.msra.mxu0 0.0
  %294 = vmatpush.xpose.msra.mxu0 0.0
  %295 = vmatpush.xpose.msra.mxu0 0.0
  %296 = vmatpush.xpose.msra.mxu0 0.0
  %297 = vmatpush.xpose.msra.mxu0 0.0
  %298 = vmatpush.xpose.msra.mxu0 0.0
  %299 = vmatpush.xpose.msra.mxu0 0.0
  %300 = vmatpush.xpose.msra.mxu0 0.0
  %301 = vmatpush.xpose.msra.mxu0 0.0
  %302 = vmatpush.xpose.msra.mxu0 0.0
  %v303 = vand.u32 %v41, 4294901760
  %v304 = vsub.f32 %v41, %v303
  %v305 = vand.u32 %v304, 4294901760
  %306 = vmatpush.xpose.msra.mxu0 %v305
  %v307 = vand.u32 %v41, 4294901760
  %308 = vmatmul.f32.gmra.mxu0 %v307
  %v309 = vpop.f32.mrf.mxu0
  %v310 = vadd.f32 %v286, %v309
  %311 = vdwg.mxu0
  %312 = vmatpush.xpose.msra.mxu0 0.0
  %313 = vmatpush.xpose.msra.mxu0 0.0
  %314 = vmatpush.xpose.msra.mxu0 0.0
  %315 = vmatpush.xpose.msra.mxu0 0.0
  %316 = vmatpush.xpose.msra.mxu0 0.0
  %317 = vmatpush.xpose.msra.mxu0 0.0
  %318 = vmatpush.xpose.msra.mxu0 0.0
  %319 = vmatpush.xpose.msra.mxu0 0.0
  %320 = vmatpush.xpose.msra.mxu0 0.0
  %321 = vmatpush.xpose.msra.mxu0 0.0
  %322 = vmatpush.xpose.msra.mxu0 0.0
  %323 = vmatpush.xpose.msra.mxu0 0.0
  %324 = vmatpush.xpose.msra.mxu0 0.0
  %325 = vmatpush.xpose.msra.mxu0 0.0
  %326 = vmatpush.xpose.msra.mxu0 0.0
  %v327 = vand.u32 %v41, 4294901760
  %328 = vmatpush.xpose.msra.mxu0 %v327
  %v329 = vand.u32 %v41, 4294901760
  %330 = vmatmul.f32.gmra.mxu0 %v329
  %v331 = vpop.f32.mrf.mxu0
  %v332 = vadd.f32 %v310, %v331
  %333 = vdwg.mxu0
  %334 = vmatpush.xpose.msra.mxu0 0.0
  %335 = vmatpush.xpose.msra.mxu0 0.0
  %336 = vmatpush.xpose.msra.mxu0 0.0
  %337 = vmatpush.xpose.msra.mxu0 0.0
  %338 = vmatpush.xpose.msra.mxu0 0.0
  %339 = vmatpush.xpose.msra.mxu0 0.0
  %340 = vmatpush.xpose.msra.mxu0 0.0
  %341 = vmatpush.xpose.msra.mxu0 0.0
  %342 = vmatpush.xpose.msra.mxu0 0.0
  %343 = vmatpush.xpose.msra.mxu0 0.0
  %344 = vmatpush.xpose.msra.mxu0 0.0
  %345 = vmatpush.xpose.msra.mxu0 0.0
  %346 = vmatpush.xpose.msra.mxu0 0.0
  %347 = vmatpush.xpose.msra.mxu0 0.0
  %348 = vmatpush.xpose.msra.mxu0 0.0
  %v349 = vand.u32 %v35, 4294901760
  %350 = vmatpush.xpose.msra.mxu0 %v349
  %v351 = vand.u32 %v35, 4294901760
  %v352 = vsub.f32 %v35, %v351
  %v353 = vand.u32 %v352, 4294901760
  %v354 = vsub.f32 %v352, %v353
  %v355 = vand.u32 %v354, 4294901760
  %356 = vmatmul.f32.gmra.mxu0 %v355
  %v357 = vpop.f32.mrf.mxu0
  %v358 = vadd.f32 %v332, %v357
  %359 = vdwg.mxu0
  %360 = vmatpush.xpose.msra.mxu0 0.0
  %361 = vmatpush.xpose.msra.mxu0 0.0
  %362 = vmatpush.xpose.msra.mxu0 0.0
  %363 = vmatpush.xpose.msra.mxu0 0.0
  %364 = vmatpush.xpose.msra.mxu0 0.0
  %365 = vmatpush.xpose.msra.mxu0 0.0
  %366 = vmatpush.xpose.msra.mxu0 0.0
  %367 = vmatpush.xpose.msra.mxu0 0.0
  %368 = vmatpush.xpose.msra.mxu0 0.0
  %369 = vmatpush.xpose.msra.mxu0 0.0
  %370 = vmatpush.xpose.msra.mxu0 0.0
  %371 = vmatpush.xpose.msra.mxu0 0.0
  %372 = vmatpush.xpose.msra.mxu0 0.0
  %373 = vmatpush.xpose.msra.mxu0 0.0
  %374 = vmatpush.xpose.msra.mxu0 0.0
  %v375 = vand.u32 %v35, 4294901760
  %v376 = vsub.f32 %v35, %v375
  %v377 = vand.u32 %v376, 4294901760
  %v378 = vsub.f32 %v376, %v377
  %v379 = vand.u32 %v378, 4294901760
  %380 = vmatpush.xpose.msra.mxu0 %v379
  %v381 = vand.u32 %v35, 4294901760
  %382 = vmatmul.f32.gmra.mxu0 %v381
  %v383 = vpop.f32.mrf.mxu0
  %v384 = vadd.f32 %v358, %v383
  %385 = vdwg.mxu0
  %386 = vmatpush.xpose.msra.mxu0 0.0
  %387 = vmatpush.xpose.msra.mxu0 0.0
  %388 = vmatpush.xpose.msra.mxu0 0.0
  %389 = vmatpush.xpose.msra.mxu0 0.0
  %390 = vmatpush.xpose.msra.mxu0 0.0
  %391 = vmatpush.xpose.msra.mxu0 0.0
  %392 = vmatpush.xpose.msra.mxu0 0.0
  %393 = vmatpush.xpose.msra.mxu0 0.0
  %394 = vmatpush.xpose.msra.mxu0 0.0
  %395 = vmatpush.xpose.msra.mxu0 0.0
  %396 = vmatpush.xpose.msra.mxu0 0.0
  %397 = vmatpush.xpose.msra.mxu0 0.0
  %398 = vmatpush.xpose.msra.mxu0 0.0
  %399 = vmatpush.xpose.msra.mxu0 0.0
  %400 = vmatpush.xpose.msra.mxu0 0.0
  %v401 = vand.u32 %v35, 4294901760
  %v402 = vsub.f32 %v35, %v401
  %403 = vmatpush.xpose.msra.mxu0 %v402
  %v404 = vand.u32 %v35, 4294901760
  %v405 = vsub.f32 %v35, %v404
  %406 = vmatmul.f32.gmra.mxu0 %v405
  %v407 = vpop.f32.mrf.mxu0
  %v408 = vadd.f32 %v384, %v407
  %409 = vdwg.mxu0
  %410 = vmatpush.xpose.msra.mxu0 0.0
  %411 = vmatpush.xpose.msra.mxu0 0.0
  %412 = vmatpush.xpose.msra.mxu0 0.0
  %413 = vmatpush.xpose.msra.mxu0 0.0
  %414 = vmatpush.xpose.msra.mxu0 0.0
  %415 = vmatpush.xpose.msra.mxu0 0.0
  %416 = vmatpush.xpose.msra.mxu0 0.0
  %417 = vmatpush.xpose.msra.mxu0 0.0
  %418 = vmatpush.xpose.msra.mxu0 0.0
  %419 = vmatpush.xpose.msra.mxu0 0.0
  %420 = vmatpush.xpose.msra.mxu0 0.0
  %421 = vmatpush.xpose.msra.mxu0 0.0
  %422 = vmatpush.xpose.msra.mxu0 0.0
  %423 = vmatpush.xpose.msra.mxu0 0.0
  %424 = vmatpush.xpose.msra.mxu0 0.0
  %v425 = vand.u32 %v35, 4294901760
  %426 = vmatpush.xpose.msra.mxu0 %v425
  %v427 = vand.u32 %v35, 4294901760
  %v428 = vsub.f32 %v35, %v427
  %v429 = vand.u32 %v428, 4294901760
  %430 = vmatmul.f32.gmra.mxu0 %v429
  %v431 = vpop.f32.mrf.mxu0
  %v432 = vadd.f32 %v408, %v431
  %433 = vdwg.mxu0
  %434 = vmatpush.xpose.msra.mxu0 0.0
  %435 = vmatpush.xpose.msra.mxu0 0.0
  %436 = vmatpush.xpose.msra.mxu0 0.0
  %437 = vmatpush.xpose.msra.mxu0 0.0
  %438 = vmatpush.xpose.msra.mxu0 0.0
  %439 = vmatpush.xpose.msra.mxu0 0.0
  %440 = vmatpush.xpose.msra.mxu0 0.0
  %441 = vmatpush.xpose.msra.mxu0 0.0
  %442 = vmatpush.xpose.msra.mxu0 0.0
  %443 = vmatpush.xpose.msra.mxu0 0.0
  %444 = vmatpush.xpose.msra.mxu0 0.0
  %445 = vmatpush.xpose.msra.mxu0 0.0
  %446 = vmatpush.xpose.msra.mxu0 0.0
  %447 = vmatpush.xpose.msra.mxu0 0.0
  %448 = vmatpush.xpose.msra.mxu0 0.0
  %v449 = vand.u32 %v35, 4294901760
  %v450 = vsub.f32 %v35, %v449
  %v451 = vand.u32 %v450, 4294901760
  %452 = vmatpush.xpose.msra.mxu0 %v451
  %v453 = vand.u32 %v35, 4294901760
  %454 = vmatmul.f32.gmra.mxu0 %v453
  %v455 = vpop.f32.mrf.mxu0
  %v456 = vadd.f32 %v432, %v455
  %457 = vdwg.mxu0
  %458 = vmatpush.xpose.msra.mxu0 0.0
  %459 = vmatpush.xpose.msra.mxu0 0.0
  %460 = vmatpush.xpose.msra.mxu0 0.0
  %461 = vmatpush.xpose.msra.mxu0 0.0
  %462 = vmatpush.xpose.msra.mxu0 0.0
  %463 = vmatpush.xpose.msra.mxu0 0.0
  %464 = vmatpush.xpose.msra.mxu0 0.0
  %465 = vmatpush.xpose.msra.mxu0 0.0
  %466 = vmatpush.xpose.msra.mxu0 0.0
  %467 = vmatpush.xpose.msra.mxu0 0.0
  %468 = vmatpush.xpose.msra.mxu0 0.0
  %469 = vmatpush.xpose.msra.mxu0 0.0
  %470 = vmatpush.xpose.msra.mxu0 0.0
  %471 = vmatpush.xpose.msra.mxu0 0.0
  %472 = vmatpush.xpose.msra.mxu0 0.0
  %v473 = vand.u32 %v35, 4294901760
  %474 = vmatpush.xpose.msra.mxu0 %v473
  %v475 = vand.u32 %v35, 4294901760
  %476 = vmatmul.f32.gmra.mxu0 %v475
  %v477 = vpop.f32.mrf.mxu0
  %v478 = vadd.f32 %v456, %v477
  %479 = vdwg.mxu0
  %480 = vmatpush.xpose.msra.mxu0 0.0
  %481 = vmatpush.xpose.msra.mxu0 0.0
  %482 = vmatpush.xpose.msra.mxu0 0.0
  %483 = vmatpush.xpose.msra.mxu0 0.0
  %484 = vmatpush.xpose.msra.mxu0 0.0
  %485 = vmatpush.xpose.msra.mxu0 0.0
  %486 = vmatpush.xpose.msra.mxu0 0.0
  %487 = vmatpush.xpose.msra.mxu0 0.0
  %488 = vmatpush.xpose.msra.mxu0 0.0
  %489 = vmatpush.xpose.msra.mxu0 0.0
  %490 = vmatpush.xpose.msra.mxu0 0.0
  %491 = vmatpush.xpose.msra.mxu0 0.0
  %492 = vmatpush.xpose.msra.mxu0 0.0
  %493 = vmatpush.xpose.msra.mxu0 0.0
  %494 = vmatpush.xpose.msra.mxu0 0.0
  %v495 = vand.u32 %v36, 4294901760
  %496 = vmatpush.xpose.msra.mxu0 %v495
  %v497 = vand.u32 %v36, 4294901760
  %v498 = vsub.f32 %v36, %v497
  %v499 = vand.u32 %v498, 4294901760
  %v500 = vsub.f32 %v498, %v499
  %v501 = vand.u32 %v500, 4294901760
  %502 = vmatmul.f32.gmra.mxu0 %v501
  %v503 = vpop.f32.mrf.mxu0
  %v504 = vadd.f32 %v478, %v503
  %505 = vdwg.mxu0
  %506 = vmatpush.xpose.msra.mxu0 0.0
  %507 = vmatpush.xpose.msra.mxu0 0.0
  %508 = vmatpush.xpose.msra.mxu0 0.0
  %509 = vmatpush.xpose.msra.mxu0 0.0
  %510 = vmatpush.xpose.msra.mxu0 0.0
  %511 = vmatpush.xpose.msra.mxu0 0.0
  %512 = vmatpush.xpose.msra.mxu0 0.0
  %513 = vmatpush.xpose.msra.mxu0 0.0
  %514 = vmatpush.xpose.msra.mxu0 0.0
  %515 = vmatpush.xpose.msra.mxu0 0.0
  %516 = vmatpush.xpose.msra.mxu0 0.0
  %517 = vmatpush.xpose.msra.mxu0 0.0
  %518 = vmatpush.xpose.msra.mxu0 0.0
  %519 = vmatpush.xpose.msra.mxu0 0.0
  %520 = vmatpush.xpose.msra.mxu0 0.0
  %v521 = vand.u32 %v36, 4294901760
  %v522 = vsub.f32 %v36, %v521
  %v523 = vand.u32 %v522, 4294901760
  %v524 = vsub.f32 %v522, %v523
  %v525 = vand.u32 %v524, 4294901760
  %526 = vmatpush.xpose.msra.mxu0 %v525
  %v527 = vand.u32 %v36, 4294901760
  %528 = vmatmul.f32.gmra.mxu0 %v527
  %v529 = vpop.f32.mrf.mxu0
  %v530 = vadd.f32 %v504, %v529
  %531 = vdwg.mxu0
  %532 = vmatpush.xpose.msra.mxu0 0.0
  %533 = vmatpush.xpose.msra.mxu0 0.0
  %534 = vmatpush.xpose.msra.mxu0 0.0
  %535 = vmatpush.xpose.msra.mxu0 0.0
  %536 = vmatpush.xpose.msra.mxu0 0.0
  %537 = vmatpush.xpose.msra.mxu0 0.0
  %538 = vmatpush.xpose.msra.mxu0 0.0
  %539 = vmatpush.xpose.msra.mxu0 0.0
  %540 = vmatpush.xpose.msra.mxu0 0.0
  %541 = vmatpush.xpose.msra.mxu0 0.0
  %542 = vmatpush.xpose.msra.mxu0 0.0
  %543 = vmatpush.xpose.msra.mxu0 0.0
  %544 = vmatpush.xpose.msra.mxu0 0.0
  %545 = vmatpush.xpose.msra.mxu0 0.0
  %546 = vmatpush.xpose.msra.mxu0 0.0
  %v547 = vand.u32 %v36, 4294901760
  %v548 = vsub.f32 %v36, %v547
  %549 = vmatpush.xpose.msra.mxu0 %v548
  %v550 = vand.u32 %v36, 4294901760
  %v551 = vsub.f32 %v36, %v550
  %552 = vmatmul.f32.gmra.mxu0 %v551
  %v553 = vpop.f32.mrf.mxu0
  %v554 = vadd.f32 %v530, %v553
  %555 = vdwg.mxu0
  %556 = vmatpush.xpose.msra.mxu0 0.0
  %557 = vmatpush.xpose.msra.mxu0 0.0
  %558 = vmatpush.xpose.msra.mxu0 0.0
  %559 = vmatpush.xpose.msra.mxu0 0.0
  %560 = vmatpush.xpose.msra.mxu0 0.0
  %561 = vmatpush.xpose.msra.mxu0 0.0
  %562 = vmatpush.xpose.msra.mxu0 0.0
  %563 = vmatpush.xpose.msra.mxu0 0.0
  %564 = vmatpush.xpose.msra.mxu0 0.0
  %565 = vmatpush.xpose.msra.mxu0 0.0
  %566 = vmatpush.xpose.msra.mxu0 0.0
  %567 = vmatpush.xpose.msra.mxu0 0.0
  %568 = vmatpush.xpose.msra.mxu0 0.0
  %569 = vmatpush.xpose.msra.mxu0 0.0
  %570 = vmatpush.xpose.msra.mxu0 0.0
  %v571 = vand.u32 %v36, 4294901760
  %572 = vmatpush.xpose.msra.mxu0 %v571
  %v573 = vand.u32 %v36, 4294901760
  %v574 = vsub.f32 %v36, %v573
  %v575 = vand.u32 %v574, 4294901760
  %576 = vmatmul.f32.gmra.mxu0 %v575
  %v577 = vpop.f32.mrf.mxu0
  %v578 = vadd.f32 %v554, %v577
  %579 = vdwg.mxu0
  %580 = vmatpush.xpose.msra.mxu0 0.0
  %581 = vmatpush.xpose.msra.mxu0 0.0
  %582 = vmatpush.xpose.msra.mxu0 0.0
  %583 = vmatpush.xpose.msra.mxu0 0.0
  %584 = vmatpush.xpose.msra.mxu0 0.0
  %585 = vmatpush.xpose.msra.mxu0 0.0
  %586 = vmatpush.xpose.msra.mxu0 0.0
  %587 = vmatpush.xpose.msra.mxu0 0.0
  %588 = vmatpush.xpose.msra.mxu0 0.0
  %589 = vmatpush.xpose.msra.mxu0 0.0
  %590 = vmatpush.xpose.msra.mxu0 0.0
  %591 = vmatpush.xpose.msra.mxu0 0.0
  %592 = vmatpush.xpose.msra.mxu0 0.0
  %593 = vmatpush.xpose.msra.mxu0 0.0
  %594 = vmatpush.xpose.msra.mxu0 0.0
  %v595 = vand.u32 %v36, 4294901760
  %v596 = vsub.f32 %v36, %v595
  %v597 = vand.u32 %v596, 4294901760
  %598 = vmatpush.xpose.msra.mxu0 %v597
  %v599 = vand.u32 %v36, 4294901760
  %600 = vmatmul.f32.gmra.mxu0 %v599
  %v601 = vpop.f32.mrf.mxu0
  %v602 = vadd.f32 %v578, %v601
  %603 = vdwg.mxu0
  %604 = vmatpush.xpose.msra.mxu0 0.0
  %605 = vmatpush.xpose.msra.mxu0 0.0
  %606 = vmatpush.xpose.msra.mxu0 0.0
  %607 = vmatpush.xpose.msra.mxu0 0.0
  %608 = vmatpush.xpose.msra.mxu0 0.0
  %609 = vmatpush.xpose.msra.mxu0 0.0
  %610 = vmatpush.xpose.msra.mxu0 0.0
  %611 = vmatpush.xpose.msra.mxu0 0.0
  %612 = vmatpush.xpose.msra.mxu0 0.0
  %613 = vmatpush.xpose.msra.mxu0 0.0
  %614 = vmatpush.xpose.msra.mxu0 0.0
  %615 = vmatpush.xpose.msra.mxu0 0.0
  %616 = vmatpush.xpose.msra.mxu0 0.0
  %617 = vmatpush.xpose.msra.mxu0 0.0
  %618 = vmatpush.xpose.msra.mxu0 0.0
  %v619 = vand.u32 %v36, 4294901760
  %620 = vmatpush.xpose.msra.mxu0 %v619
  %v621 = vand.u32 %v36, 4294901760
  %622 = vmatmul.f32.gmra.mxu0 %v621
  %v623 = vpop.f32.mrf.mxu0
  %v624 = vadd.f32 %v602, %v623
  %625 = vdwg.mxu0
  %vm626 = vcmask 64512
  %v628 = vsel %vm626, %v31, 0
  %630 = vmatpush.msra.mxu0 0.0
  %631 = vmatpush.msra.mxu0 0.0
  %632 = vmatpush.msra.mxu0 0.0
  %633 = vmatpush.msra.mxu0 0.0
  %634 = vmatpush.msra.mxu0 0.0
  %635 = vmatpush.msra.mxu0 0.0
  %636 = vmatpush.msra.mxu0 0.0
  %637 = vmatpush.msra.mxu0 0.0
  %638 = vmatpush.msra.mxu0 0.0
  %639 = vmatpush.msra.mxu0 0.0
  %640 = vmatpush.msra.mxu0 0.0
  %641 = vmatpush.msra.mxu0 0.0
  %642 = vmatpush.msra.mxu0 0.0
  %643 = vmatpush.msra.mxu0 0.0
  %644 = vmatpush.msra.mxu0 0.0
  %v645 = vand.u32 %v624, 4294901760
  %646 = vmatpush.msra.mxu0 %v645
  %v647 = vand.u32 %v628, 4294901760
  %v648 = vsub.f32 %v628, %v647
  %v649 = vand.u32 %v648, 4294901760
  %v650 = vsub.f32 %v648, %v649
  %v651 = vand.u32 %v650, 4294901760
  %652 = vmatmul.f32.gmra.mxu0 %v651
  %v653 = vpop.f32.mrf.mxu0
  %v654 = vadd.f32 0.0, %v653
  %655 = vdwg.mxu0
  %656 = vmatpush.msra.mxu0 0.0
  %657 = vmatpush.msra.mxu0 0.0
  %658 = vmatpush.msra.mxu0 0.0
  %659 = vmatpush.msra.mxu0 0.0
  %660 = vmatpush.msra.mxu0 0.0
  %661 = vmatpush.msra.mxu0 0.0
  %662 = vmatpush.msra.mxu0 0.0
  %663 = vmatpush.msra.mxu0 0.0
  %664 = vmatpush.msra.mxu0 0.0
  %665 = vmatpush.msra.mxu0 0.0
  %666 = vmatpush.msra.mxu0 0.0
  %667 = vmatpush.msra.mxu0 0.0
  %668 = vmatpush.msra.mxu0 0.0
  %669 = vmatpush.msra.mxu0 0.0
  %670 = vmatpush.msra.mxu0 0.0
  %v671 = vand.u32 %v624, 4294901760
  %v672 = vsub.f32 %v624, %v671
  %v673 = vand.u32 %v672, 4294901760
  %v674 = vsub.f32 %v672, %v673
  %v675 = vand.u32 %v674, 4294901760
  %676 = vmatpush.msra.mxu0 %v675
  %v677 = vand.u32 %v628, 4294901760
  %678 = vmatmul.f32.gmra.mxu0 %v677
  %v679 = vpop.f32.mrf.mxu0
  %v680 = vadd.f32 %v654, %v679
  %681 = vdwg.mxu0
  %682 = vmatpush.msra.mxu0 0.0
  %683 = vmatpush.msra.mxu0 0.0
  %684 = vmatpush.msra.mxu0 0.0
  %685 = vmatpush.msra.mxu0 0.0
  %686 = vmatpush.msra.mxu0 0.0
  %687 = vmatpush.msra.mxu0 0.0
  %688 = vmatpush.msra.mxu0 0.0
  %689 = vmatpush.msra.mxu0 0.0
  %690 = vmatpush.msra.mxu0 0.0
  %691 = vmatpush.msra.mxu0 0.0
  %692 = vmatpush.msra.mxu0 0.0
  %693 = vmatpush.msra.mxu0 0.0
  %694 = vmatpush.msra.mxu0 0.0
  %695 = vmatpush.msra.mxu0 0.0
  %696 = vmatpush.msra.mxu0 0.0
  %v697 = vand.u32 %v624, 4294901760
  %v698 = vsub.f32 %v624, %v697
  %699 = vmatpush.msra.mxu0 %v698
  %v700 = vand.u32 %v628, 4294901760
  %v701 = vsub.f32 %v628, %v700
  %702 = vmatmul.f32.gmra.mxu0 %v701
  %v703 = vpop.f32.mrf.mxu0
  %v704 = vadd.f32 %v680, %v703
  %705 = vdwg.mxu0
  %706 = vmatpush.msra.mxu0 0.0
  %707 = vmatpush.msra.mxu0 0.0
  %708 = vmatpush.msra.mxu0 0.0
  %709 = vmatpush.msra.mxu0 0.0
  %710 = vmatpush.msra.mxu0 0.0
  %711 = vmatpush.msra.mxu0 0.0
  %712 = vmatpush.msra.mxu0 0.0
  %713 = vmatpush.msra.mxu0 0.0
  %714 = vmatpush.msra.mxu0 0.0
  %715 = vmatpush.msra.mxu0 0.0
  %716 = vmatpush.msra.mxu0 0.0
  %717 = vmatpush.msra.mxu0 0.0
  %718 = vmatpush.msra.mxu0 0.0
  %719 = vmatpush.msra.mxu0 0.0
  %720 = vmatpush.msra.mxu0 0.0
  %v721 = vand.u32 %v624, 4294901760
  %722 = vmatpush.msra.mxu0 %v721
  %v723 = vand.u32 %v628, 4294901760
  %v724 = vsub.f32 %v628, %v723
  %v725 = vand.u32 %v724, 4294901760
  %726 = vmatmul.f32.gmra.mxu0 %v725
  %v727 = vpop.f32.mrf.mxu0
  %v728 = vadd.f32 %v704, %v727
  %729 = vdwg.mxu0
  %730 = vmatpush.msra.mxu0 0.0
  %731 = vmatpush.msra.mxu0 0.0
  %732 = vmatpush.msra.mxu0 0.0
  %733 = vmatpush.msra.mxu0 0.0
  %734 = vmatpush.msra.mxu0 0.0
  %735 = vmatpush.msra.mxu0 0.0
  %736 = vmatpush.msra.mxu0 0.0
  %737 = vmatpush.msra.mxu0 0.0
  %738 = vmatpush.msra.mxu0 0.0
  %739 = vmatpush.msra.mxu0 0.0
  %740 = vmatpush.msra.mxu0 0.0
  %741 = vmatpush.msra.mxu0 0.0
  %742 = vmatpush.msra.mxu0 0.0
  %743 = vmatpush.msra.mxu0 0.0
  %744 = vmatpush.msra.mxu0 0.0
  %v745 = vand.u32 %v624, 4294901760
  %v746 = vsub.f32 %v624, %v745
  %v747 = vand.u32 %v746, 4294901760
  %748 = vmatpush.msra.mxu0 %v747
  %v749 = vand.u32 %v628, 4294901760
  %750 = vmatmul.f32.gmra.mxu0 %v749
  %v751 = vpop.f32.mrf.mxu0
  %v752 = vadd.f32 %v728, %v751
  %753 = vdwg.mxu0
  %754 = vmatpush.msra.mxu0 0.0
  %755 = vmatpush.msra.mxu0 0.0
  %756 = vmatpush.msra.mxu0 0.0
  %757 = vmatpush.msra.mxu0 0.0
  %758 = vmatpush.msra.mxu0 0.0
  %759 = vmatpush.msra.mxu0 0.0
  %760 = vmatpush.msra.mxu0 0.0
  %761 = vmatpush.msra.mxu0 0.0
  %762 = vmatpush.msra.mxu0 0.0
  %763 = vmatpush.msra.mxu0 0.0
  %764 = vmatpush.msra.mxu0 0.0
  %765 = vmatpush.msra.mxu0 0.0
  %766 = vmatpush.msra.mxu0 0.0
  %767 = vmatpush.msra.mxu0 0.0
  %768 = vmatpush.msra.mxu0 0.0
  %v769 = vand.u32 %v624, 4294901760
  %770 = vmatpush.msra.mxu0 %v769
  %v771 = vand.u32 %v628, 4294901760
  %772 = vmatmul.f32.gmra.mxu0 %v771
  %v773 = vpop.f32.mrf.mxu0
  %v774 = vadd.f32 %v752, %v773
  %775 = vdwg.mxu0
  %v776 = vmul.f32 %v23, 136.0
  %778 = vrot.lane.b32.xlu0 %v776, 7
  %v779 = vpop.permute.xlu0 %778
  %v781 = vadd.f32 %v774, %v779
  %v782 = vmul.f32 %v774, %v31
  %vm783 = vcmask 63488
  %v784 = vsel %vm783, %v782, 0.0
  %785 = vadd.xlane.f32.xlu0 %v784
  %v786 = vpop.xlane.xlu0 %785
  %v787 = vmul.f32 %v23, %v23
  %v788 = vmul.f32 %v787, 136.0
  %v789 = vadd.f32 %v786, %v788
  %v790 = vmul.f32 %v781, 0.0015432099
  %v791 = vmul.f32 %v789, 0.0015432099
  %v792 = vmul.f32 %v790, %v790
  %794 = vrot.lane.b32.xlu0 %v792, 121
  %v795 = vpop.permute.xlu0 %794
  %v797 = vsub.f32 %v791, %v795
  %v798 = vmax.f32 %v797, 0.0
  %v799 = vadd.f32 %v798, 1e-05
  %v800 = vrsqrt.pop %v799
  %v801 = vmul.f32 %v800, %v799
  %v802 = vmul.f32 %v801, %v800
  %v803 = vmul.f32 0.5, %v802
  %v804 = vsub.f32 1.5, %v803
  %v805 = vmul.f32 %v800, %v804
  %vm806 = vweird.f32 %v799
  %vm807 = vweird.f32 %v800
  %vm808 = vmor %vm806, %vm807
  %v809 = vsel %vm808, %v800, %v805
  %v810 = vmul.f32 %v24, %v809
  %812 = vset.pattern.permute.xlu0 0
  %813 = vperm.xlu0 %812, %v810
  %v814 = vpop.permute.xlu0 %813
  %v816 = vmul.f32 %v31, %v814
  %818 = vrot.lane.b32.xlu0 %v790, 121
  %v819 = vpop.permute.xlu0 %818
  %v821 = vmul.f32 %v810, %v819
  %v822 = vsub.f32 %v25, %v821
  %824 = vset.pattern.permute.xlu0 0
  %825 = vperm.xlu0 %824, %v822
  %v826 = vpop.permute.xlu0 %825
  %v829 = vsel %vm626, %v816, 0
  %831 = vmatpush.msra.mxu0 0.0
  %832 = vmatpush.msra.mxu0 0.0
  %833 = vmatpush.msra.mxu0 0.0
  %834 = vmatpush.msra.mxu0 0.0
  %835 = vmatpush.msra.mxu0 0.0
  %836 = vmatpush.msra.mxu0 0.0
  %837 = vmatpush.msra.mxu0 0.0
  %838 = vmatpush.msra.mxu0 0.0
  %839 = vmatpush.msra.mxu0 0.0
  %840 = vmatpush.msra.mxu0 0.0
  %841 = vmatpush.msra.mxu0 0.0
  %842 = vmatpush.msra.mxu0 0.0
  %843 = vmatpush.msra.mxu0 0.0
  %844 = vmatpush.msra.mxu0 0.0
  %845 = vmatpush.msra.mxu0 0.0
  %v846 = vand.u32 %v35, 4294901760
  %847 = vmatpush.msra.mxu0 %v846
  %v848 = vand.u32 %v829, 4294901760
  %v849 = vsub.f32 %v829, %v848
  %v850 = vand.u32 %v849, 4294901760
  %v851 = vsub.f32 %v849, %v850
  %v852 = vand.u32 %v851, 4294901760
  %853 = vmatmul.f32.gmra.mxu0 %v852
  %v854 = vpop.f32.mrf.mxu0
  %v855 = vadd.f32 %v826, %v854
  %856 = vdwg.mxu0
  %857 = vmatpush.msra.mxu0 0.0
  %858 = vmatpush.msra.mxu0 0.0
  %859 = vmatpush.msra.mxu0 0.0
  %860 = vmatpush.msra.mxu0 0.0
  %861 = vmatpush.msra.mxu0 0.0
  %862 = vmatpush.msra.mxu0 0.0
  %863 = vmatpush.msra.mxu0 0.0
  %864 = vmatpush.msra.mxu0 0.0
  %865 = vmatpush.msra.mxu0 0.0
  %866 = vmatpush.msra.mxu0 0.0
  %867 = vmatpush.msra.mxu0 0.0
  %868 = vmatpush.msra.mxu0 0.0
  %869 = vmatpush.msra.mxu0 0.0
  %870 = vmatpush.msra.mxu0 0.0
  %871 = vmatpush.msra.mxu0 0.0
  %v872 = vand.u32 %v35, 4294901760
  %v873 = vsub.f32 %v35, %v872
  %v874 = vand.u32 %v873, 4294901760
  %v875 = vsub.f32 %v873, %v874
  %v876 = vand.u32 %v875, 4294901760
  %877 = vmatpush.msra.mxu0 %v876
  %v878 = vand.u32 %v829, 4294901760
  %879 = vmatmul.f32.gmra.mxu0 %v878
  %v880 = vpop.f32.mrf.mxu0
  %v881 = vadd.f32 %v855, %v880
  %882 = vdwg.mxu0
  %883 = vmatpush.msra.mxu0 0.0
  %884 = vmatpush.msra.mxu0 0.0
  %885 = vmatpush.msra.mxu0 0.0
  %886 = vmatpush.msra.mxu0 0.0
  %887 = vmatpush.msra.mxu0 0.0
  %888 = vmatpush.msra.mxu0 0.0
  %889 = vmatpush.msra.mxu0 0.0
  %890 = vmatpush.msra.mxu0 0.0
  %891 = vmatpush.msra.mxu0 0.0
  %892 = vmatpush.msra.mxu0 0.0
  %893 = vmatpush.msra.mxu0 0.0
  %894 = vmatpush.msra.mxu0 0.0
  %895 = vmatpush.msra.mxu0 0.0
  %896 = vmatpush.msra.mxu0 0.0
  %897 = vmatpush.msra.mxu0 0.0
  %v898 = vand.u32 %v35, 4294901760
  %v899 = vsub.f32 %v35, %v898
  %900 = vmatpush.msra.mxu0 %v899
  %v901 = vand.u32 %v829, 4294901760
  %v902 = vsub.f32 %v829, %v901
  %903 = vmatmul.f32.gmra.mxu0 %v902
  %v904 = vpop.f32.mrf.mxu0
  %v905 = vadd.f32 %v881, %v904
  %906 = vdwg.mxu0
  %907 = vmatpush.msra.mxu0 0.0
  %908 = vmatpush.msra.mxu0 0.0
  %909 = vmatpush.msra.mxu0 0.0
  %910 = vmatpush.msra.mxu0 0.0
  %911 = vmatpush.msra.mxu0 0.0
  %912 = vmatpush.msra.mxu0 0.0
  %913 = vmatpush.msra.mxu0 0.0
  %914 = vmatpush.msra.mxu0 0.0
  %915 = vmatpush.msra.mxu0 0.0
  %916 = vmatpush.msra.mxu0 0.0
  %917 = vmatpush.msra.mxu0 0.0
  %918 = vmatpush.msra.mxu0 0.0
  %919 = vmatpush.msra.mxu0 0.0
  %920 = vmatpush.msra.mxu0 0.0
  %921 = vmatpush.msra.mxu0 0.0
  %v922 = vand.u32 %v35, 4294901760
  %923 = vmatpush.msra.mxu0 %v922
  %v924 = vand.u32 %v829, 4294901760
  %v925 = vsub.f32 %v829, %v924
  %v926 = vand.u32 %v925, 4294901760
  %927 = vmatmul.f32.gmra.mxu0 %v926
  %v928 = vpop.f32.mrf.mxu0
  %v929 = vadd.f32 %v905, %v928
  %930 = vdwg.mxu0
  %931 = vmatpush.msra.mxu0 0.0
  %932 = vmatpush.msra.mxu0 0.0
  %933 = vmatpush.msra.mxu0 0.0
  %934 = vmatpush.msra.mxu0 0.0
  %935 = vmatpush.msra.mxu0 0.0
  %936 = vmatpush.msra.mxu0 0.0
  %937 = vmatpush.msra.mxu0 0.0
  %938 = vmatpush.msra.mxu0 0.0
  %939 = vmatpush.msra.mxu0 0.0
  %940 = vmatpush.msra.mxu0 0.0
  %941 = vmatpush.msra.mxu0 0.0
  %942 = vmatpush.msra.mxu0 0.0
  %943 = vmatpush.msra.mxu0 0.0
  %944 = vmatpush.msra.mxu0 0.0
  %945 = vmatpush.msra.mxu0 0.0
  %v946 = vand.u32 %v35, 4294901760
  %v947 = vsub.f32 %v35, %v946
  %v948 = vand.u32 %v947, 4294901760
  %949 = vmatpush.msra.mxu0 %v948
  %v950 = vand.u32 %v829, 4294901760
  %951 = vmatmul.f32.gmra.mxu0 %v950
  %v952 = vpop.f32.mrf.mxu0
  %v953 = vadd.f32 %v929, %v952
  %954 = vdwg.mxu0
  %955 = vmatpush.msra.mxu0 0.0
  %956 = vmatpush.msra.mxu0 0.0
  %957 = vmatpush.msra.mxu0 0.0
  %958 = vmatpush.msra.mxu0 0.0
  %959 = vmatpush.msra.mxu0 0.0
  %960 = vmatpush.msra.mxu0 0.0
  %961 = vmatpush.msra.mxu0 0.0
  %962 = vmatpush.msra.mxu0 0.0
  %963 = vmatpush.msra.mxu0 0.0
  %964 = vmatpush.msra.mxu0 0.0
  %965 = vmatpush.msra.mxu0 0.0
  %966 = vmatpush.msra.mxu0 0.0
  %967 = vmatpush.msra.mxu0 0.0
  %968 = vmatpush.msra.mxu0 0.0
  %969 = vmatpush.msra.mxu0 0.0
  %v970 = vand.u32 %v35, 4294901760
  %971 = vmatpush.msra.mxu0 %v970
  %v972 = vand.u32 %v829, 4294901760
  %973 = vmatmul.f32.gmra.mxu0 %v972
  %v974 = vpop.f32.mrf.mxu0
  %v975 = vadd.f32 %v953, %v974
  %976 = vdwg.mxu0
  %977 = vmatpush.msra.mxu0 0.0
  %978 = vmatpush.msra.mxu0 0.0
  %979 = vmatpush.msra.mxu0 0.0
  %980 = vmatpush.msra.mxu0 0.0
  %981 = vmatpush.msra.mxu0 0.0
  %982 = vmatpush.msra.mxu0 0.0
  %983 = vmatpush.msra.mxu0 0.0
  %984 = vmatpush.msra.mxu0 0.0
  %985 = vmatpush.msra.mxu0 0.0
  %986 = vmatpush.msra.mxu0 0.0
  %987 = vmatpush.msra.mxu0 0.0
  %988 = vmatpush.msra.mxu0 0.0
  %989 = vmatpush.msra.mxu0 0.0
  %990 = vmatpush.msra.mxu0 0.0
  %991 = vmatpush.msra.mxu0 0.0
  %v992 = vand.u32 %v36, 4294901760
  %993 = vmatpush.msra.mxu0 %v992
  %v994 = vand.u32 %v829, 4294901760
  %v995 = vsub.f32 %v829, %v994
  %v996 = vand.u32 %v995, 4294901760
  %v997 = vsub.f32 %v995, %v996
  %v998 = vand.u32 %v997, 4294901760
  %999 = vmatmul.f32.gmra.mxu0 %v998
  %v1000 = vpop.f32.mrf.mxu0
  %v1001 = vadd.f32 %v826, %v1000
  %1002 = vdwg.mxu0
  %1003 = vmatpush.msra.mxu0 0.0
  %1004 = vmatpush.msra.mxu0 0.0
  %1005 = vmatpush.msra.mxu0 0.0
  %1006 = vmatpush.msra.mxu0 0.0
  %1007 = vmatpush.msra.mxu0 0.0
  %1008 = vmatpush.msra.mxu0 0.0
  %1009 = vmatpush.msra.mxu0 0.0
  %1010 = vmatpush.msra.mxu0 0.0
  %1011 = vmatpush.msra.mxu0 0.0
  %1012 = vmatpush.msra.mxu0 0.0
  %1013 = vmatpush.msra.mxu0 0.0
  %1014 = vmatpush.msra.mxu0 0.0
  %1015 = vmatpush.msra.mxu0 0.0
  %1016 = vmatpush.msra.mxu0 0.0
  %1017 = vmatpush.msra.mxu0 0.0
  %v1018 = vand.u32 %v36, 4294901760
  %v1019 = vsub.f32 %v36, %v1018
  %v1020 = vand.u32 %v1019, 4294901760
  %v1021 = vsub.f32 %v1019, %v1020
  %v1022 = vand.u32 %v1021, 4294901760
  %1023 = vmatpush.msra.mxu0 %v1022
  %v1024 = vand.u32 %v829, 4294901760
  %1025 = vmatmul.f32.gmra.mxu0 %v1024
  %v1026 = vpop.f32.mrf.mxu0
  %v1027 = vadd.f32 %v1001, %v1026
  %1028 = vdwg.mxu0
  %1029 = vmatpush.msra.mxu0 0.0
  %1030 = vmatpush.msra.mxu0 0.0
  %1031 = vmatpush.msra.mxu0 0.0
  %1032 = vmatpush.msra.mxu0 0.0
  %1033 = vmatpush.msra.mxu0 0.0
  %1034 = vmatpush.msra.mxu0 0.0
  %1035 = vmatpush.msra.mxu0 0.0
  %1036 = vmatpush.msra.mxu0 0.0
  %1037 = vmatpush.msra.mxu0 0.0
  %1038 = vmatpush.msra.mxu0 0.0
  %1039 = vmatpush.msra.mxu0 0.0
  %1040 = vmatpush.msra.mxu0 0.0
  %1041 = vmatpush.msra.mxu0 0.0
  %1042 = vmatpush.msra.mxu0 0.0
  %1043 = vmatpush.msra.mxu0 0.0
  %v1044 = vand.u32 %v36, 4294901760
  %v1045 = vsub.f32 %v36, %v1044
  %1046 = vmatpush.msra.mxu0 %v1045
  %v1047 = vand.u32 %v829, 4294901760
  %v1048 = vsub.f32 %v829, %v1047
  %1049 = vmatmul.f32.gmra.mxu0 %v1048
  %v1050 = vpop.f32.mrf.mxu0
  %v1051 = vadd.f32 %v1027, %v1050
  %1052 = vdwg.mxu0
  %1053 = vmatpush.msra.mxu0 0.0
  %1054 = vmatpush.msra.mxu0 0.0
  %1055 = vmatpush.msra.mxu0 0.0
  %1056 = vmatpush.msra.mxu0 0.0
  %1057 = vmatpush.msra.mxu0 0.0
  %1058 = vmatpush.msra.mxu0 0.0
  %1059 = vmatpush.msra.mxu0 0.0
  %1060 = vmatpush.msra.mxu0 0.0
  %1061 = vmatpush.msra.mxu0 0.0
  %1062 = vmatpush.msra.mxu0 0.0
  %1063 = vmatpush.msra.mxu0 0.0
  %1064 = vmatpush.msra.mxu0 0.0
  %1065 = vmatpush.msra.mxu0 0.0
  %1066 = vmatpush.msra.mxu0 0.0
  %1067 = vmatpush.msra.mxu0 0.0
  %v1068 = vand.u32 %v36, 4294901760
  %1069 = vmatpush.msra.mxu0 %v1068
  %v1070 = vand.u32 %v829, 4294901760
  %v1071 = vsub.f32 %v829, %v1070
  %v1072 = vand.u32 %v1071, 4294901760
  %1073 = vmatmul.f32.gmra.mxu0 %v1072
  %v1074 = vpop.f32.mrf.mxu0
  %v1075 = vadd.f32 %v1051, %v1074
  %1076 = vdwg.mxu0
  %1077 = vmatpush.msra.mxu0 0.0
  %1078 = vmatpush.msra.mxu0 0.0
  %1079 = vmatpush.msra.mxu0 0.0
  %1080 = vmatpush.msra.mxu0 0.0
  %1081 = vmatpush.msra.mxu0 0.0
  %1082 = vmatpush.msra.mxu0 0.0
  %1083 = vmatpush.msra.mxu0 0.0
  %1084 = vmatpush.msra.mxu0 0.0
  %1085 = vmatpush.msra.mxu0 0.0
  %1086 = vmatpush.msra.mxu0 0.0
  %1087 = vmatpush.msra.mxu0 0.0
  %1088 = vmatpush.msra.mxu0 0.0
  %1089 = vmatpush.msra.mxu0 0.0
  %1090 = vmatpush.msra.mxu0 0.0
  %1091 = vmatpush.msra.mxu0 0.0
  %v1092 = vand.u32 %v36, 4294901760
  %v1093 = vsub.f32 %v36, %v1092
  %v1094 = vand.u32 %v1093, 4294901760
  %1095 = vmatpush.msra.mxu0 %v1094
  %v1096 = vand.u32 %v829, 4294901760
  %1097 = vmatmul.f32.gmra.mxu0 %v1096
  %v1098 = vpop.f32.mrf.mxu0
  %v1099 = vadd.f32 %v1075, %v1098
  %1100 = vdwg.mxu0
  %1101 = vmatpush.msra.mxu0 0.0
  %1102 = vmatpush.msra.mxu0 0.0
  %1103 = vmatpush.msra.mxu0 0.0
  %1104 = vmatpush.msra.mxu0 0.0
  %1105 = vmatpush.msra.mxu0 0.0
  %1106 = vmatpush.msra.mxu0 0.0
  %1107 = vmatpush.msra.mxu0 0.0
  %1108 = vmatpush.msra.mxu0 0.0
  %1109 = vmatpush.msra.mxu0 0.0
  %1110 = vmatpush.msra.mxu0 0.0
  %1111 = vmatpush.msra.mxu0 0.0
  %1112 = vmatpush.msra.mxu0 0.0
  %1113 = vmatpush.msra.mxu0 0.0
  %1114 = vmatpush.msra.mxu0 0.0
  %1115 = vmatpush.msra.mxu0 0.0
  %v1116 = vand.u32 %v36, 4294901760
  %1117 = vmatpush.msra.mxu0 %v1116
  %v1118 = vand.u32 %v829, 4294901760
  %1119 = vmatmul.f32.gmra.mxu0 %v1118
  %v1120 = vpop.f32.mrf.mxu0
  %v1121 = vadd.f32 %v1099, %v1120
  %1122 = vdwg.mxu0
  %v1123 = vmax.f32 %v975, 0.0
  %v1124 = vmax.f32 %v1121, 0.0
  %1125 = vst [vmem:[%s5] sm:$0x7f] %v1123
  %1126 = vst [vmem:[%s5 + $0x8] sm:$0x7f] %v1124
  %1127 = vmatpush.msra.mxu0 0.0
  %1128 = vmatpush.msra.mxu0 0.0
  %1129 = vmatpush.msra.mxu0 0.0
  %1130 = vmatpush.msra.mxu0 0.0
  %1131 = vmatpush.msra.mxu0 0.0
  %1132 = vmatpush.msra.mxu0 0.0
  %1133 = vmatpush.msra.mxu0 0.0
  %1134 = vmatpush.msra.mxu0 0.0
  %1135 = vmatpush.msra.mxu0 0.0
  %1136 = vmatpush.msra.mxu0 0.0
  %1137 = vmatpush.msra.mxu0 0.0
  %1138 = vmatpush.msra.mxu0 0.0
  %1139 = vmatpush.msra.mxu0 0.0
  %1140 = vmatpush.msra.mxu0 0.0
  %1141 = vmatpush.msra.mxu0 0.0
  %v1142 = vand.u32 %v40, 4294901760
  %1143 = vmatpush.msra.mxu0 %v1142
  %v1144 = vand.u32 %v829, 4294901760
  %v1145 = vsub.f32 %v829, %v1144
  %v1146 = vand.u32 %v1145, 4294901760
  %v1147 = vsub.f32 %v1145, %v1146
  %v1148 = vand.u32 %v1147, 4294901760
  %1149 = vmatmul.f32.gmra.mxu0 %v1148
  %v1150 = vpop.f32.mrf.mxu0
  %v1151 = vadd.f32 %v826, %v1150
  %1152 = vdwg.mxu0
  %1153 = vmatpush.msra.mxu0 0.0
  %1154 = vmatpush.msra.mxu0 0.0
  %1155 = vmatpush.msra.mxu0 0.0
  %1156 = vmatpush.msra.mxu0 0.0
  %1157 = vmatpush.msra.mxu0 0.0
  %1158 = vmatpush.msra.mxu0 0.0
  %1159 = vmatpush.msra.mxu0 0.0
  %1160 = vmatpush.msra.mxu0 0.0
  %1161 = vmatpush.msra.mxu0 0.0
  %1162 = vmatpush.msra.mxu0 0.0
  %1163 = vmatpush.msra.mxu0 0.0
  %1164 = vmatpush.msra.mxu0 0.0
  %1165 = vmatpush.msra.mxu0 0.0
  %1166 = vmatpush.msra.mxu0 0.0
  %1167 = vmatpush.msra.mxu0 0.0
  %v1168 = vand.u32 %v40, 4294901760
  %v1169 = vsub.f32 %v40, %v1168
  %v1170 = vand.u32 %v1169, 4294901760
  %v1171 = vsub.f32 %v1169, %v1170
  %v1172 = vand.u32 %v1171, 4294901760
  %1173 = vmatpush.msra.mxu0 %v1172
  %v1174 = vand.u32 %v829, 4294901760
  %1175 = vmatmul.f32.gmra.mxu0 %v1174
  %v1176 = vpop.f32.mrf.mxu0
  %v1177 = vadd.f32 %v1151, %v1176
  %1178 = vdwg.mxu0
  %1179 = vmatpush.msra.mxu0 0.0
  %1180 = vmatpush.msra.mxu0 0.0
  %1181 = vmatpush.msra.mxu0 0.0
  %1182 = vmatpush.msra.mxu0 0.0
  %1183 = vmatpush.msra.mxu0 0.0
  %1184 = vmatpush.msra.mxu0 0.0
  %1185 = vmatpush.msra.mxu0 0.0
  %1186 = vmatpush.msra.mxu0 0.0
  %1187 = vmatpush.msra.mxu0 0.0
  %1188 = vmatpush.msra.mxu0 0.0
  %1189 = vmatpush.msra.mxu0 0.0
  %1190 = vmatpush.msra.mxu0 0.0
  %1191 = vmatpush.msra.mxu0 0.0
  %1192 = vmatpush.msra.mxu0 0.0
  %1193 = vmatpush.msra.mxu0 0.0
  %v1194 = vand.u32 %v40, 4294901760
  %v1195 = vsub.f32 %v40, %v1194
  %1196 = vmatpush.msra.mxu0 %v1195
  %v1197 = vand.u32 %v829, 4294901760
  %v1198 = vsub.f32 %v829, %v1197
  %1199 = vmatmul.f32.gmra.mxu0 %v1198
  %v1200 = vpop.f32.mrf.mxu0
  %v1201 = vadd.f32 %v1177, %v1200
  %1202 = vdwg.mxu0
  %1203 = vmatpush.msra.mxu0 0.0
  %1204 = vmatpush.msra.mxu0 0.0
  %1205 = vmatpush.msra.mxu0 0.0
  %1206 = vmatpush.msra.mxu0 0.0
  %1207 = vmatpush.msra.mxu0 0.0
  %1208 = vmatpush.msra.mxu0 0.0
  %1209 = vmatpush.msra.mxu0 0.0
  %1210 = vmatpush.msra.mxu0 0.0
  %1211 = vmatpush.msra.mxu0 0.0
  %1212 = vmatpush.msra.mxu0 0.0
  %1213 = vmatpush.msra.mxu0 0.0
  %1214 = vmatpush.msra.mxu0 0.0
  %1215 = vmatpush.msra.mxu0 0.0
  %1216 = vmatpush.msra.mxu0 0.0
  %1217 = vmatpush.msra.mxu0 0.0
  %v1218 = vand.u32 %v40, 4294901760
  %1219 = vmatpush.msra.mxu0 %v1218
  %v1220 = vand.u32 %v829, 4294901760
  %v1221 = vsub.f32 %v829, %v1220
  %v1222 = vand.u32 %v1221, 4294901760
  %1223 = vmatmul.f32.gmra.mxu0 %v1222
  %v1224 = vpop.f32.mrf.mxu0
  %v1225 = vadd.f32 %v1201, %v1224
  %1226 = vdwg.mxu0
  %1227 = vmatpush.msra.mxu0 0.0
  %1228 = vmatpush.msra.mxu0 0.0
  %1229 = vmatpush.msra.mxu0 0.0
  %1230 = vmatpush.msra.mxu0 0.0
  %1231 = vmatpush.msra.mxu0 0.0
  %1232 = vmatpush.msra.mxu0 0.0
  %1233 = vmatpush.msra.mxu0 0.0
  %1234 = vmatpush.msra.mxu0 0.0
  %1235 = vmatpush.msra.mxu0 0.0
  %1236 = vmatpush.msra.mxu0 0.0
  %1237 = vmatpush.msra.mxu0 0.0
  %1238 = vmatpush.msra.mxu0 0.0
  %1239 = vmatpush.msra.mxu0 0.0
  %1240 = vmatpush.msra.mxu0 0.0
  %1241 = vmatpush.msra.mxu0 0.0
  %v1242 = vand.u32 %v40, 4294901760
  %v1243 = vsub.f32 %v40, %v1242
  %v1244 = vand.u32 %v1243, 4294901760
  %1245 = vmatpush.msra.mxu0 %v1244
  %v1246 = vand.u32 %v829, 4294901760
  %1247 = vmatmul.f32.gmra.mxu0 %v1246
  %v1248 = vpop.f32.mrf.mxu0
  %v1249 = vadd.f32 %v1225, %v1248
  %1250 = vdwg.mxu0
  %1251 = vmatpush.msra.mxu0 0.0
  %1252 = vmatpush.msra.mxu0 0.0
  %1253 = vmatpush.msra.mxu0 0.0
  %1254 = vmatpush.msra.mxu0 0.0
  %1255 = vmatpush.msra.mxu0 0.0
  %1256 = vmatpush.msra.mxu0 0.0
  %1257 = vmatpush.msra.mxu0 0.0
  %1258 = vmatpush.msra.mxu0 0.0
  %1259 = vmatpush.msra.mxu0 0.0
  %1260 = vmatpush.msra.mxu0 0.0
  %1261 = vmatpush.msra.mxu0 0.0
  %1262 = vmatpush.msra.mxu0 0.0
  %1263 = vmatpush.msra.mxu0 0.0
  %1264 = vmatpush.msra.mxu0 0.0
  %1265 = vmatpush.msra.mxu0 0.0
  %v1266 = vand.u32 %v40, 4294901760
  %1267 = vmatpush.msra.mxu0 %v1266
  %v1268 = vand.u32 %v829, 4294901760
  %1269 = vmatmul.f32.gmra.mxu0 %v1268
  %v1270 = vpop.f32.mrf.mxu0
  %v1271 = vadd.f32 %v1249, %v1270
  %1272 = vdwg.mxu0
  %1273 = vmatpush.msra.mxu0 0.0
  %1274 = vmatpush.msra.mxu0 0.0
  %1275 = vmatpush.msra.mxu0 0.0
  %1276 = vmatpush.msra.mxu0 0.0
  %1277 = vmatpush.msra.mxu0 0.0
  %1278 = vmatpush.msra.mxu0 0.0
  %1279 = vmatpush.msra.mxu0 0.0
  %1280 = vmatpush.msra.mxu0 0.0
  %1281 = vmatpush.msra.mxu0 0.0
  %1282 = vmatpush.msra.mxu0 0.0
  %1283 = vmatpush.msra.mxu0 0.0
  %1284 = vmatpush.msra.mxu0 0.0
  %1285 = vmatpush.msra.mxu0 0.0
  %1286 = vmatpush.msra.mxu0 0.0
  %1287 = vmatpush.msra.mxu0 0.0
  %v1288 = vand.u32 %v41, 4294901760
  %1289 = vmatpush.msra.mxu0 %v1288
  %v1290 = vand.u32 %v829, 4294901760
  %v1291 = vsub.f32 %v829, %v1290
  %v1292 = vand.u32 %v1291, 4294901760
  %v1293 = vsub.f32 %v1291, %v1292
  %v1294 = vand.u32 %v1293, 4294901760
  %1295 = vmatmul.f32.gmra.mxu0 %v1294
  %v1296 = vpop.f32.mrf.mxu0
  %v1297 = vadd.f32 %v826, %v1296
  %1298 = vdwg.mxu0
  %1299 = vmatpush.msra.mxu0 0.0
  %1300 = vmatpush.msra.mxu0 0.0
  %1301 = vmatpush.msra.mxu0 0.0
  %1302 = vmatpush.msra.mxu0 0.0
  %1303 = vmatpush.msra.mxu0 0.0
  %1304 = vmatpush.msra.mxu0 0.0
  %1305 = vmatpush.msra.mxu0 0.0
  %1306 = vmatpush.msra.mxu0 0.0
  %1307 = vmatpush.msra.mxu0 0.0
  %1308 = vmatpush.msra.mxu0 0.0
  %1309 = vmatpush.msra.mxu0 0.0
  %1310 = vmatpush.msra.mxu0 0.0
  %1311 = vmatpush.msra.mxu0 0.0
  %1312 = vmatpush.msra.mxu0 0.0
  %1313 = vmatpush.msra.mxu0 0.0
  %v1314 = vand.u32 %v41, 4294901760
  %v1315 = vsub.f32 %v41, %v1314
  %v1316 = vand.u32 %v1315, 4294901760
  %v1317 = vsub.f32 %v1315, %v1316
  %v1318 = vand.u32 %v1317, 4294901760
  %1319 = vmatpush.msra.mxu0 %v1318
  %v1320 = vand.u32 %v829, 4294901760
  %1321 = vmatmul.f32.gmra.mxu0 %v1320
  %v1322 = vpop.f32.mrf.mxu0
  %v1323 = vadd.f32 %v1297, %v1322
  %1324 = vdwg.mxu0
  %1325 = vmatpush.msra.mxu0 0.0
  %1326 = vmatpush.msra.mxu0 0.0
  %1327 = vmatpush.msra.mxu0 0.0
  %1328 = vmatpush.msra.mxu0 0.0
  %1329 = vmatpush.msra.mxu0 0.0
  %1330 = vmatpush.msra.mxu0 0.0
  %1331 = vmatpush.msra.mxu0 0.0
  %1332 = vmatpush.msra.mxu0 0.0
  %1333 = vmatpush.msra.mxu0 0.0
  %1334 = vmatpush.msra.mxu0 0.0
  %1335 = vmatpush.msra.mxu0 0.0
  %1336 = vmatpush.msra.mxu0 0.0
  %1337 = vmatpush.msra.mxu0 0.0
  %1338 = vmatpush.msra.mxu0 0.0
  %1339 = vmatpush.msra.mxu0 0.0
  %v1340 = vand.u32 %v41, 4294901760
  %v1341 = vsub.f32 %v41, %v1340
  %1342 = vmatpush.msra.mxu0 %v1341
  %v1343 = vand.u32 %v829, 4294901760
  %v1344 = vsub.f32 %v829, %v1343
  %1345 = vmatmul.f32.gmra.mxu0 %v1344
  %v1346 = vpop.f32.mrf.mxu0
  %v1347 = vadd.f32 %v1323, %v1346
  %1348 = vdwg.mxu0
  %1349 = vmatpush.msra.mxu0 0.0
  %1350 = vmatpush.msra.mxu0 0.0
  %1351 = vmatpush.msra.mxu0 0.0
  %1352 = vmatpush.msra.mxu0 0.0
  %1353 = vmatpush.msra.mxu0 0.0
  %1354 = vmatpush.msra.mxu0 0.0
  %1355 = vmatpush.msra.mxu0 0.0
  %1356 = vmatpush.msra.mxu0 0.0
  %1357 = vmatpush.msra.mxu0 0.0
  %1358 = vmatpush.msra.mxu0 0.0
  %1359 = vmatpush.msra.mxu0 0.0
  %1360 = vmatpush.msra.mxu0 0.0
  %1361 = vmatpush.msra.mxu0 0.0
  %1362 = vmatpush.msra.mxu0 0.0
  %1363 = vmatpush.msra.mxu0 0.0
  %v1364 = vand.u32 %v41, 4294901760
  %1365 = vmatpush.msra.mxu0 %v1364
  %v1366 = vand.u32 %v829, 4294901760
  %v1367 = vsub.f32 %v829, %v1366
  %v1368 = vand.u32 %v1367, 4294901760
  %1369 = vmatmul.f32.gmra.mxu0 %v1368
  %v1370 = vpop.f32.mrf.mxu0
  %v1371 = vadd.f32 %v1347, %v1370
  %1372 = vdwg.mxu0
  %1373 = vmatpush.msra.mxu0 0.0
  %1374 = vmatpush.msra.mxu0 0.0
  %1375 = vmatpush.msra.mxu0 0.0
  %1376 = vmatpush.msra.mxu0 0.0
  %1377 = vmatpush.msra.mxu0 0.0
  %1378 = vmatpush.msra.mxu0 0.0
  %1379 = vmatpush.msra.mxu0 0.0
  %1380 = vmatpush.msra.mxu0 0.0
  %1381 = vmatpush.msra.mxu0 0.0
  %1382 = vmatpush.msra.mxu0 0.0
  %1383 = vmatpush.msra.mxu0 0.0
  %1384 = vmatpush.msra.mxu0 0.0
  %1385 = vmatpush.msra.mxu0 0.0
  %1386 = vmatpush.msra.mxu0 0.0
  %1387 = vmatpush.msra.mxu0 0.0
  %v1388 = vand.u32 %v41, 4294901760
  %v1389 = vsub.f32 %v41, %v1388
  %v1390 = vand.u32 %v1389, 4294901760
  %1391 = vmatpush.msra.mxu0 %v1390
  %v1392 = vand.u32 %v829, 4294901760
  %1393 = vmatmul.f32.gmra.mxu0 %v1392
  %v1394 = vpop.f32.mrf.mxu0
  %v1395 = vadd.f32 %v1371, %v1394
  %1396 = vdwg.mxu0
  %1397 = vmatpush.msra.mxu0 0.0
  %1398 = vmatpush.msra.mxu0 0.0
  %1399 = vmatpush.msra.mxu0 0.0
  %1400 = vmatpush.msra.mxu0 0.0
  %1401 = vmatpush.msra.mxu0 0.0
  %1402 = vmatpush.msra.mxu0 0.0
  %1403 = vmatpush.msra.mxu0 0.0
  %1404 = vmatpush.msra.mxu0 0.0
  %1405 = vmatpush.msra.mxu0 0.0
  %1406 = vmatpush.msra.mxu0 0.0
  %1407 = vmatpush.msra.mxu0 0.0
  %1408 = vmatpush.msra.mxu0 0.0
  %1409 = vmatpush.msra.mxu0 0.0
  %1410 = vmatpush.msra.mxu0 0.0
  %1411 = vmatpush.msra.mxu0 0.0
  %v1412 = vand.u32 %v41, 4294901760
  %1413 = vmatpush.msra.mxu0 %v1412
  %v1414 = vand.u32 %v829, 4294901760
  %1415 = vmatmul.f32.gmra.mxu0 %v1414
  %v1416 = vpop.f32.mrf.mxu0
  %v1417 = vadd.f32 %v1395, %v1416
  %1418 = vdwg.mxu0
  %v1419 = vmax.f32 %v1271, 0.0
  %v1420 = vmax.f32 %v1417, 0.0
  %s1421 = scalar_lea.vmem %s5, 16
  %1422 = vst [vmem:[%s1421] sm:$0x7f] %v1419
  %1423 = vst [vmem:[%s1421 + $0x8] sm:$0x7f] %v1420
  %v1424 = vmul.f32 %v810, %v23
  %v1425 = vadd.f32 %v1424, %v822
  %v1426 = vmax.f32 %v1425, 0.0
  %vm1427 = vcmask 6144
  %1428 = vst.msk [vmem:[%s6] sm:$0x7f] %vm1427, %v1426
  // Predicated region
  $region22: #{model_forward.1} parent=0 // pred_check
    _
  $region23: #{model_forward.1} parent=0 // pred_check_branch
    %1430 = sbr.rel (0) target = $region25
  $region24: #{model_forward.1} parent=0 // pred_region
    _
  $region25: #{model_forward.1} parent=0 // pred_fallthru
    _
  // Predicated region
  $region26: #{model_forward.1} parent=0 // pred_check
    _
  $region27: #{model_forward.1} parent=0 // pred_check_branch
    %1432 = sbr.rel (0) target = $region29
  $region28: #{model_forward.1} parent=0 // pred_region
    _
  $region29: #{model_forward.1} parent=0 // pred_fallthru
    _
  // Predicated region
  $region30: #{model_forward.1} parent=0 // pred_check
    _
  $region31: #{model_forward.1} parent=0 // pred_check_branch
    %1434 = sbr.rel (0) target = $region33
  $region32: #{model_forward.1} parent=0 // pred_region
    _
  $region33: #{model_forward.1} parent=0 // pred_fallthru
    _
  // Predicated region
  $region34: #{model_forward.1} parent=0 // pred_check
    _
  $region35: #{model_forward.1} parent=0 // pred_check_branch
    %1436 = sbr.rel (0) target = $region37
  $region36: #{model_forward.1} parent=0 // pred_region
    _
  $region37: #{model_forward.1} parent=0 // pred_fallthru
    _

</llo_original>
